<compile_context>
chip_gen: v7x
topology: tpu7x:2x2x1
jax: 0.10.0
libtpu: 0.0.40
codegen_flags: <defaults>
</compile_context>

<pallas_src>
import functools

import jax
import jax.numpy as jnp
from jax import lax
from jax.experimental import pallas as pl
from jax.experimental.pallas import tpu as pltpu

EPS = 1e-5


# -----------------------------------------------------------------------------
# Fused kernel: one (batch-tile, layer) grid step.
#   l == 0 : pre-stage  p = h + Linear(h),  h = SiLU(BN(Conv1x1(x)))  (BN folded)
#   every l: one TransformerLayer on the VMEM-resident token state.
# -----------------------------------------------------------------------------
def _block_kernel(x_ref, wc_ref, bnb_ref, wl_ref, bl_ref,
                  wqkv_ref, bqkv_ref, wo_ref, bo_ref, wffn_ref,
                  out_ref, *, Bt, S, c1, c2, num_heads, use_conv):
    dh = c2 // num_heads
    l = pl.program_id(1)

    @pl.when(l == 0)
    def _init():
        x = x_ref[...].reshape(Bt * S, c1)
        if use_conv:
            h = jnp.dot(x.astype(jnp.bfloat16), wc_ref[...],
                        preferred_element_type=jnp.float32) + bnb_ref[...]
            h = h * (1.0 / (1.0 + jnp.exp(-h)))                          # SiLU
        else:
            h = x.astype(jnp.float32)
        p = h + jnp.dot(h.astype(jnp.bfloat16), wl_ref[...],
                        preferred_element_type=jnp.float32) + bl_ref[...]
        out_ref[...] = p.reshape(Bt, S, c2).astype(out_ref.dtype)

    # ---- one TransformerLayer on the resident state (f32 carry) --------------
    x2 = out_ref[...].reshape(Bt * S, c2).astype(jnp.float32)

    # fused QKV projection (layer q/k/v linears + 1/sqrt(dh) scale pre-folded)
    qkv = jnp.dot(x2.astype(jnp.bfloat16), wqkv_ref[l],
                  preferred_element_type=jnp.float32) + bqkv_ref[l]      # (Bt*S, 3c2)
    qkv3 = qkv.reshape(Bt, S, 3 * c2)

    # attention per batch element / per head; heads are lane-concatenated so the
    # output projection is a single K=c2 matmul after the loops.
    per_batch = []
    for b in range(Bt):
        qkv_b = qkv3[b]                                                  # (S, 3c2)
        heads = []
        for h_i in range(num_heads):
            qs = qkv_b[:, h_i * dh:(h_i + 1) * dh].astype(jnp.bfloat16)
            ks = qkv_b[:, c2 + h_i * dh:c2 + (h_i + 1) * dh].astype(jnp.bfloat16)
            vs = qkv_b[:, 2 * c2 + h_i * dh:2 * c2 + (h_i + 1) * dh].astype(jnp.bfloat16)
            s = lax.dot_general(qs, ks, (((1,), (1,)), ((), ())),
                                preferred_element_type=jnp.float32)     # (S, S)
            m = jnp.max(s, axis=-1, keepdims=True)
            e = jnp.exp(s - m)
            a = e * pl.reciprocal(jnp.sum(e, axis=-1, keepdims=True), approx=True)
            heads.append(jnp.dot(a.astype(jnp.bfloat16), vs,
                                 preferred_element_type=jnp.float32))   # (S, dh)
        per_batch.append(jnp.concatenate(heads, axis=-1))                # (S, c2)
    attn = jnp.concatenate(per_batch, axis=0)                            # (Bt*S, c2)

    x2 = x2 + jnp.dot(attn.astype(jnp.bfloat16), wo_ref[l],
                      preferred_element_type=jnp.float32) + bo_ref[l]    # residual 1
    x2 = x2 + jnp.dot(x2.astype(jnp.bfloat16), wffn_ref[l],
                      preferred_element_type=jnp.float32)                # fc2(fc1(x)) + x
    out_ref[...] = x2.reshape(Bt, S, c2).astype(out_ref.dtype)


# -----------------------------------------------------------------------------
# Wrapper: host-side weight folding + layout plumbing, one pallas_call for the rest.
# -----------------------------------------------------------------------------
def transformer_block_forward(x_nchw, params, *, num_heads, batch_tile=None):
    hp = lax.Precision.HIGHEST
    B, c1, H, W = x_nchw.shape
    S = H * W
    c2 = params["lin_w"].shape[0]
    L = len(params["layers"])
    use_conv = params["conv_w"] is not None
    assert c2 % num_heads == 0
    if not use_conv:
        assert c1 == c2, "without the 1x1 Conv the input channels must equal c2"
    dh = c2 // num_heads

    # Batch tile: amortize per-step overhead, but keep >=2 steps on the parallel
    # axis so both v7x TensorCores are fed (neutral on single-TC v5e/v6e).
    if batch_tile is None:
        batch_tile = B // 2 if (B >= 2 and B % 2 == 0) else 1
    Bt = batch_tile
    assert B % Bt == 0

    # ---- fold BatchNorm (inference mode) into the 1x1 conv; bf16 weights ------
    if use_conv:
        sc = params["bn_gamma"] * lax.rsqrt(params["bn_var"] + EPS)
        wc = (params["conv_w"].T * sc[None, :]).astype(jnp.bfloat16)     # (c1, c2)
        bnb = (params["bn_beta"] - params["bn_mean"] * sc)[None, :]      # (1, c2) f32
    else:
        wc = jnp.zeros((c1, c2), jnp.bfloat16)
        bnb = jnp.zeros((1, c2), jnp.float32)
    wl = params["lin_w"].T.astype(jnp.bfloat16)                          # (c2, c2)
    bl = params["lin_b"][None, :]                                        # (1, c2)

    # ---- per-layer folds: q/k/v into in_proj, attn scale into q, fc2(fc1) -----
    scale = 1.0 / float(dh) ** 0.5
    wqkv_l, bqkv_l, wo_l, bo_l, wffn_l = [], [], [], [], []
    for lp in params["layers"]:
        wiq, wik, wiv = jnp.split(lp["in_proj_w"], 3, axis=0)            # (c2, c2) each
        w_q = jnp.matmul(wiq, lp["q_w"], precision=hp).T * scale         # scale folded
        w_k = jnp.matmul(wik, lp["k_w"], precision=hp).T
        w_v = jnp.matmul(wiv, lp["v_w"], precision=hp).T
        biq, bik, biv = jnp.split(lp["in_proj_b"], 3)
        wqkv_l.append(jnp.concatenate([w_q, w_k, w_v], axis=1))          # (c2, 3c2)
        bqkv_l.append(jnp.concatenate([biq * scale, bik, biv])[None, :]) # (1, 3c2)
        wo_l.append(lp["out_w"].T)                                       # (c2, c2)
        bo_l.append(lp["out_b"][None, :])                                # (1, c2)
        wffn_l.append(jnp.matmul(lp["fc1_w"].T, lp["fc2_w"].T, precision=hp))
    wqkv = jnp.stack(wqkv_l).astype(jnp.bfloat16)                        # (L, c2, 3c2)
    bqkv = jnp.stack(bqkv_l)                                             # (L, 1, 3c2)
    wo = jnp.stack(wo_l).astype(jnp.bfloat16)                            # (L, c2, c2)
    bo = jnp.stack(bo_l)                                                 # (L, 1, c2)
    wffn = jnp.stack(wffn_l).astype(jnp.bfloat16)                        # (L, c2, c2)

    # tokens: NCHW -> (B, S, c1)   (matches x.flatten(2) ordering)
    x_tok = jnp.transpose(x_nchw.reshape(B, c1, S), (0, 2, 1))

    # Explicit VMEM budget: 2x-buffered activation blocks + resident L-stacked
    # weights + in-kernel temps, with 2x headroom; capped below v7x's 64 MiB.
    need = (2 * Bt * S * (c1 + c2) * 4                    # x / state blocks (x2 buf)
            + (c1 * c2 + c2 * c2) * 2 + 2 * c2 * 4        # stage-0 weights/biases
            + 2 * L * (5 * c2 * c2 * 2 + 4 * c2 * 4)      # resident layer weights
            + Bt * S * 3 * c2 * 4                         # qkv temp
            + 2 * S * S * 4 + 2 * Bt * S * c2 * 4)        # scores / attn temps
    vmem_limit = int(min(max(2 * need, 16 * 1024 * 1024), 60 * 1024 * 1024))

    kern = functools.partial(_block_kernel, Bt=Bt, S=S, c1=c1, c2=c2,
                             num_heads=num_heads, use_conv=use_conv)
    out = pl.pallas_call(
        kern,
        grid=(B // Bt, L),
        in_specs=[
            pl.BlockSpec((Bt, S, c1), lambda b, l: (b, 0, 0)),
            pl.BlockSpec((c1, c2), lambda b, l: (0, 0)),
            pl.BlockSpec((1, c2), lambda b, l: (0, 0)),
            pl.BlockSpec((c2, c2), lambda b, l: (0, 0)),
            pl.BlockSpec((1, c2), lambda b, l: (0, 0)),
            # L-stacked per-layer weights: constant index -> DMA'd once, resident.
            pl.BlockSpec((L, c2, 3 * c2), lambda b, l: (0, 0, 0)),
            pl.BlockSpec((L, 1, 3 * c2), lambda b, l: (0, 0, 0)),
            pl.BlockSpec((L, c2, c2), lambda b, l: (0, 0, 0)),
            pl.BlockSpec((L, 1, c2), lambda b, l: (0, 0, 0)),
            pl.BlockSpec((L, c2, c2), lambda b, l: (0, 0, 0)),
        ],
        out_specs=pl.BlockSpec((Bt, S, c2), lambda b, l: (b, 0, 0)),
        out_shape=jax.ShapeDtypeStruct((B, S, c2), jnp.float32),
        compiler_params=pltpu.CompilerParams(
            dimension_semantics=("parallel", "arbitrary"),
            vmem_limit_bytes=vmem_limit),
    )(x_tok, wc, bnb, wl, bl, wqkv, bqkv, wo, bo, wffn)

    # (B, S, c2) -> (B, c2, H, W)   (matches .permute(1,2,0).reshape(b,c2,w,h))
    return jnp.transpose(out, (0, 2, 1)).reshape(B, c2, H, W)


# -----------------------------------------------------------------------------
# Deterministic parameter init (PyTorch layouts: Linear/Conv weights are (out,in)).
# -----------------------------------------------------------------------------
def init_params(key, *, c1, c2, num_layers):
    use_conv = (c1 != c2)
    ks = jax.random.split(key, 4 + num_layers)

    def nrm(k, shape, s):
        return s * jax.random.normal(k, shape, jnp.float32)

    conv_w = nrm(ks[0], (c2, c1), 0.1) if use_conv else None
    bn_gamma = 1.0 + nrm(ks[1], (c2,), 0.05)
    bn_beta = nrm(jax.random.fold_in(ks[1], 1), (c2,), 0.05)
    bn_mean = nrm(jax.random.fold_in(ks[1], 2), (c2,), 0.05)
    bn_var = 1.0 + 0.1 * jnp.abs(
        jax.random.normal(jax.random.fold_in(ks[1], 3), (c2,), jnp.float32))
    lin_w = nrm(ks[2], (c2, c2), 0.05)
    lin_b = nrm(jax.random.fold_in(ks[2], 1), (c2,), 0.02)

    layers = []
    for i in range(num_layers):
        sub = jax.random.split(ks[4 + i], 8)
        layers.append(dict(
            q_w=nrm(sub[0], (c2, c2), 0.05),
            k_w=nrm(sub[1], (c2, c2), 0.05),
            v_w=nrm(sub[2], (c2, c2), 0.05),
            in_proj_w=nrm(sub[3], (3 * c2, c2), 0.05),
            in_proj_b=nrm(sub[4], (3 * c2,), 0.02),
            out_w=nrm(sub[5], (c2, c2), 0.05),
            out_b=nrm(jax.random.fold_in(sub[5], 1), (c2,), 0.02),
            fc1_w=nrm(sub[6], (c2, c2), 0.05),
            fc2_w=nrm(sub[7], (c2, c2), 0.05),
        ))
    return dict(conv_w=conv_w, bn_gamma=bn_gamma, bn_beta=bn_beta,
                bn_mean=bn_mean, bn_var=bn_var, lin_w=lin_w, lin_b=lin_b,
                layers=layers)


# Pure-JAX reference mirroring the PyTorch forward (unfolded), for self-check.
def reference_forward(x_nchw, params, *, num_heads):
    hp = lax.Precision.HIGHEST
    B, c1, H, W = x_nchw.shape
    c2 = params["lin_w"].shape[0]
    S = H * W
    dh = c2 // num_heads

    if params["conv_w"] is not None:
        y = jnp.einsum('bchw,oc->bohw', x_nchw, params["conv_w"], precision=hp)
        sc = params["bn_gamma"] * lax.rsqrt(params["bn_var"] + EPS)
        y = (y - params["bn_mean"][None, :, None, None]) * sc[None, :, None, None] \
            + params["bn_beta"][None, :, None, None]
        y = y * jax.nn.sigmoid(y)                                        # SiLU
    else:
        y = x_nchw

    p = jnp.transpose(y.reshape(B, c2, S), (2, 0, 1))                    # (S, B, c2)
    p = p + (jnp.einsum('sbc,dc->sbd', p, params["lin_w"], precision=hp)
             + params["lin_b"])

    for lp in params["layers"]:
        q = jnp.einsum('sbc,dc->sbd', p, lp["q_w"], precision=hp)
        k = jnp.einsum('sbc,dc->sbd', p, lp["k_w"], precision=hp)
        v = jnp.einsum('sbc,dc->sbd', p, lp["v_w"], precision=hp)
        wiq, wik, wiv = jnp.split(lp["in_proj_w"], 3, axis=0)
        biq, bik, biv = jnp.split(lp["in_proj_b"], 3)
        Q = jnp.einsum('sbc,dc->sbd', q, wiq, precision=hp) + biq
        K = jnp.einsum('sbc,dc->sbd', k, wik, precision=hp) + bik
        V = jnp.einsum('sbc,dc->sbd', v, wiv, precision=hp) + biv

        def heads(t):
            return jnp.transpose(t.reshape(S, B, num_heads, dh), (1, 2, 0, 3))

        Qh, Kh, Vh = heads(Q), heads(K), heads(V)
        s = jnp.einsum('bhqd,bhkd->bhqk', Qh, Kh, precision=hp) / (float(dh) ** 0.5)
        A = jax.nn.softmax(s, axis=-1)
        Oh = jnp.einsum('bhqk,bhkd->bhqd', A, Vh, precision=hp)
        O = jnp.transpose(Oh, (2, 0, 1, 3)).reshape(S, B, c2)
        attn_out = jnp.einsum('sbc,dc->sbd', O, lp["out_w"], precision=hp) \
            + lp["out_b"]
        p = attn_out + p
        p = jnp.einsum('sbc,dc->sbd',
                       jnp.einsum('sbc,dc->sbd', p, lp["fc1_w"], precision=hp),
                       lp["fc2_w"], precision=hp) + p

    return jnp.transpose(p, (1, 2, 0)).reshape(B, c2, H, W)


if __name__ == "__main__":
    B, c1, c2, H, W = 2, 32, 128, 8, 8
    num_heads, num_layers = 4, 2

    root = jax.random.PRNGKey(0)
    k_param, k_x = jax.random.split(root)
    params = init_params(k_param, c1=c1, c2=c2, num_layers=num_layers)
    x = jax.random.normal(k_x, (B, c1, H, W), jnp.float32)

    out = transformer_block_forward(x, params, num_heads=num_heads)
    out = jax.block_until_ready(out)

    ref = reference_forward(x, params, num_heads=num_heads)
    err = float(jnp.max(jnp.abs(out - ref)))
    ref_mag = float(jnp.max(jnp.abs(ref)))
    tol = 2e-2 + 2e-2 * ref_mag   # bf16 matmul operands, f32 accumulation
    assert out.shape == (B, c2, H, W) and err < tol, \
        f"mismatch: max err {err} (tol {tol})"
    print("KERNEL_OK")
</pallas_src>

<mosaic_0001>
module attributes {stable_mosaic.version = 11 : i64} {
  func.func @_block_kernel(%arg0: i32, %arg1: i32, %arg2: memref<1x64x32xf32, #tpu.memory_space<vmem>>, %arg3: memref<32x128xbf16, #tpu.memory_space<vmem>>, %arg4: memref<1x128xf32, #tpu.memory_space<vmem>>, %arg5: memref<128x128xbf16, #tpu.memory_space<vmem>>, %arg6: memref<1x128xf32, #tpu.memory_space<vmem>>, %arg7: memref<2x128x384xbf16, #tpu.memory_space<vmem>>, %arg8: memref<2x1x384xf32, #tpu.memory_space<vmem>>, %arg9: memref<2x128x128xbf16, #tpu.memory_space<vmem>>, %arg10: memref<2x1x128xf32, #tpu.memory_space<vmem>>, %arg11: memref<2x128x128xbf16, #tpu.memory_space<vmem>>, %arg12: memref<1x64x128xf32, #tpu.memory_space<vmem>>) attributes {dimension_semantics = [#tpu.dimension_semantics<parallel>, #tpu.dimension_semantics<arbitrary>], iteration_bounds = array<i64: 2, 2>, scalar_prefetch = 0 : i64, scratch_operands = 0 : i64, tpu.core_type = #tpu.core_type<tc>, window_params = [{transform_indices = @transform_0, window_bounds = array<i64: 1, 64, 32>}, {pipeline_mode = #tpu.pipeline_mode<synchronous>, transform_indices = @transform_1, window_bounds = array<i64: 32, 128>}, {pipeline_mode = #tpu.pipeline_mode<synchronous>, transform_indices = @transform_2, window_bounds = array<i64: 1, 128>}, {pipeline_mode = #tpu.pipeline_mode<synchronous>, transform_indices = @transform_3, window_bounds = array<i64: 128, 128>}, {pipeline_mode = #tpu.pipeline_mode<synchronous>, transform_indices = @transform_4, window_bounds = array<i64: 1, 128>}, {pipeline_mode = #tpu.pipeline_mode<synchronous>, transform_indices = @transform_5, window_bounds = array<i64: 2, 128, 384>}, {pipeline_mode = #tpu.pipeline_mode<synchronous>, transform_indices = @transform_6, window_bounds = array<i64: 2, 1, 384>}, {pipeline_mode = #tpu.pipeline_mode<synchronous>, transform_indices = @transform_7, window_bounds = array<i64: 2, 128, 128>}, {pipeline_mode = #tpu.pipeline_mode<synchronous>, transform_indices = @transform_8, window_bounds = array<i64: 2, 1, 128>}, {pipeline_mode = #tpu.pipeline_mode<synchronous>, transform_indices = @transform_9, window_bounds = array<i64: 2, 128, 128>}, {transform_indices = @transform_10, window_bounds = array<i64: 1, 64, 128>}]} {
    %c0_i32 = arith.constant 0 : i32
    %0 = arith.cmpi eq, %arg1, %c0_i32 : i32
    %1 = arith.extui %0 : i1 to i32
    %c0_i32_0 = arith.constant 0 : i32
    %2 = arith.cmpi ne, %1, %c0_i32_0 : i32
    scf.if %2 {
      %c0_34 = arith.constant 0 : index
      %c0_35 = arith.constant 0 : index
      %c0_36 = arith.constant 0 : index
      %113 = vector.load %arg2[%c0_34, %c0_35, %c0_36] : memref<1x64x32xf32, #tpu.memory_space<vmem>>, vector<1x64x32xf32>
      %114 = vector.shape_cast %113 : vector<1x64x32xf32> to vector<64x32xf32>
      %115 = arith.truncf %114 : vector<64x32xf32> to vector<64x32xbf16>
      %c0_37 = arith.constant 0 : index
      %c0_38 = arith.constant 0 : index
      %116 = vector.load %arg3[%c0_37, %c0_38] : memref<32x128xbf16, #tpu.memory_space<vmem>>, vector<32x128xbf16>
      %cst_39 = arith.constant dense<0.000000e+00> : vector<64x128xf32>
      %117 = tpu.matmul %115, %116, %cst_39 {dimension_numbers = #tpu.dot_dimension_numbers<[1], [0], [0], [1], [0, 0, 1, 1], [], []>} : vector<64x32xbf16>, vector<32x128xbf16>, vector<64x128xf32> -> vector<64x128xf32>
      %c0_40 = arith.constant 0 : index
      %c0_41 = arith.constant 0 : index
      %118 = vector.load %arg4[%c0_40, %c0_41] : memref<1x128xf32, #tpu.memory_space<vmem>>, vector<1x128xf32>
      %119 = vector.broadcast %118 : vector<1x128xf32> to vector<64x128xf32>
      %120 = arith.addf %117, %119 : vector<64x128xf32>
      %cst_42 = arith.constant 0.000000e+00 : f32
      %121 = vector.broadcast %cst_42 : f32 to vector<64x128xf32>
      %122 = arith.subf %121, %120 : vector<64x128xf32>
      %123 = math.exp %122 : vector<64x128xf32>
      %cst_43 = arith.constant 1.000000e+00 : f32
      %124 = vector.broadcast %cst_43 : f32 to vector<64x128xf32>
      %125 = arith.addf %124, %123 : vector<64x128xf32>
      %cst_44 = arith.constant 1.000000e+00 : f32
      %126 = vector.broadcast %cst_44 : f32 to vector<64x128xf32>
      %127 = arith.divf %126, %125 : vector<64x128xf32>
      %128 = arith.mulf %120, %127 : vector<64x128xf32>
      %129 = arith.truncf %128 : vector<64x128xf32> to vector<64x128xbf16>
      %c0_45 = arith.constant 0 : index
      %c0_46 = arith.constant 0 : index
      %130 = vector.load %arg5[%c0_45, %c0_46] : memref<128x128xbf16, #tpu.memory_space<vmem>>, vector<128x128xbf16>
      %cst_47 = arith.constant dense<0.000000e+00> : vector<64x128xf32>
      %131 = tpu.matmul %129, %130, %cst_47 {dimension_numbers = #tpu.dot_dimension_numbers<[1], [0], [0], [1], [0, 0, 1, 1], [], []>} : vector<64x128xbf16>, vector<128x128xbf16>, vector<64x128xf32> -> vector<64x128xf32>
      %132 = arith.addf %128, %131 : vector<64x128xf32>
      %c0_48 = arith.constant 0 : index
      %c0_49 = arith.constant 0 : index
      %133 = vector.load %arg6[%c0_48, %c0_49] : memref<1x128xf32, #tpu.memory_space<vmem>>, vector<1x128xf32>
      %134 = vector.broadcast %133 : vector<1x128xf32> to vector<64x128xf32>
      %135 = arith.addf %132, %134 : vector<64x128xf32>
      %136 = vector.shape_cast %135 : vector<64x128xf32> to vector<1x64x128xf32>
      %c0_50 = arith.constant 0 : index
      %c0_51 = arith.constant 0 : index
      %c0_52 = arith.constant 0 : index
      %137 = vector.load %arg12[%c0_50, %c0_51, %c0_52] : memref<1x64x128xf32, #tpu.memory_space<vmem>>, vector<1x64x128xf32>
      tpu.vector_store %arg12[%c0_50, %c0_51, %c0_52], %136 {strides = array<i32>} : memref<1x64x128xf32, #tpu.memory_space<vmem>>, vector<1x64x128xf32>,
    } else {
    }
    %c0 = arith.constant 0 : index
    %c0_1 = arith.constant 0 : index
    %c0_2 = arith.constant 0 : index
    %3 = vector.load %arg12[%c0, %c0_1, %c0_2] : memref<1x64x128xf32, #tpu.memory_space<vmem>>, vector<1x64x128xf32>
    %4 = vector.shape_cast %3 : vector<1x64x128xf32> to vector<64x128xf32>
    %5 = arith.truncf %4 : vector<64x128xf32> to vector<64x128xbf16>
    %6 = arith.index_cast %arg1 : i32 to index
    %c0_3 = arith.constant 0 : index
    %c0_4 = arith.constant 0 : index
    %7 = vector.load %arg7[%6, %c0_3, %c0_4] : memref<2x128x384xbf16, #tpu.memory_space<vmem>>, vector<1x128x384xbf16>
    %8 = vector.shape_cast %7 : vector<1x128x384xbf16> to vector<128x384xbf16>
    %cst = arith.constant dense<0.000000e+00> : vector<64x384xf32>
    %9 = tpu.matmul %5, %8, %cst {dimension_numbers = #tpu.dot_dimension_numbers<[1], [0], [0], [1], [0, 0, 1, 1], [], []>} : vector<64x128xbf16>, vector<128x384xbf16>, vector<64x384xf32> -> vector<64x384xf32>
    %10 = arith.index_cast %arg1 : i32 to index
    %c0_5 = arith.constant 0 : index
    %c0_6 = arith.constant 0 : index
    %11 = vector.load %arg8[%10, %c0_5, %c0_6] : memref<2x1x384xf32, #tpu.memory_space<vmem>>, vector<1x1x384xf32>
    %12 = vector.shape_cast %11 : vector<1x1x384xf32> to vector<1x384xf32>
    %13 = vector.broadcast %12 : vector<1x384xf32> to vector<64x384xf32>
    %14 = arith.addf %9, %13 : vector<64x384xf32>
    %15 = vector.shape_cast %14 : vector<64x384xf32> to vector<1x64x384xf32>
    %16 = vector.shape_cast %15 : vector<1x64x384xf32> to vector<64x384xf32>
    %17 = vector.extract_strided_slice %16 {offsets = [0, 0], sizes = [64, 32], strides = [1, 1]} : vector<64x384xf32> to vector<64x32xf32>
    %18 = arith.truncf %17 : vector<64x32xf32> to vector<64x32xbf16>
    %19 = vector.extract_strided_slice %16 {offsets = [0, 128], sizes = [64, 32], strides = [1, 1]} : vector<64x384xf32> to vector<64x32xf32>
    %20 = arith.truncf %19 : vector<64x32xf32> to vector<64x32xbf16>
    %21 = vector.extract_strided_slice %16 {offsets = [0, 256], sizes = [64, 32], strides = [1, 1]} : vector<64x384xf32> to vector<64x32xf32>
    %22 = arith.truncf %21 : vector<64x32xf32> to vector<64x32xbf16>
    %cst_7 = arith.constant dense<0.000000e+00> : vector<64x64xf32>
    %23 = tpu.matmul %18, %20, %cst_7 {dimension_numbers = #tpu.dot_dimension_numbers<[1], [1], [0], [0], [0, 0, 1, 0], [], []>} : vector<64x32xbf16>, vector<64x32xbf16>, vector<64x64xf32> -> vector<64x64xf32>
    %cst_8 = arith.constant dense<0xFF800000> : vector<64xf32>
    %24 = vector.multi_reduction <maximumf>, %23, %cst_8 [1] : vector<64x64xf32> to vector<64xf32>
    %25 = vector.shape_cast %24 : vector<64xf32> to vector<64x1xf32>
    %26 = vector.broadcast %25 : vector<64x1xf32> to vector<64x64xf32>
    %27 = arith.subf %23, %26 : vector<64x64xf32>
    %28 = math.exp %27 : vector<64x64xf32>
    %cst_9 = arith.constant dense<0.000000e+00> : vector<64xf32>
    %29 = vector.multi_reduction <add>, %28, %cst_9 [1] : vector<64x64xf32> to vector<64xf32>
    %30 = vector.shape_cast %29 : vector<64xf32> to vector<64x1xf32>
    %31 = tpu.reciprocal %30 {approx = true} : vector<64x1xf32> -> vector<64x1xf32>
    %32 = vector.broadcast %31 : vector<64x1xf32> to vector<64x64xf32>
    %33 = arith.mulf %28, %32 : vector<64x64xf32>
    %34 = arith.truncf %33 : vector<64x64xf32> to vector<64x64xbf16>
    %cst_10 = arith.constant dense<0.000000e+00> : vector<64x32xf32>
    %35 = tpu.matmul %34, %22, %cst_10 {dimension_numbers = #tpu.dot_dimension_numbers<[1], [0], [0], [1], [0, 0, 1, 1], [], []>} : vector<64x64xbf16>, vector<64x32xbf16>, vector<64x32xf32> -> vector<64x32xf32>
    %36 = vector.extract_strided_slice %16 {offsets = [0, 32], sizes = [64, 32], strides = [1, 1]} : vector<64x384xf32> to vector<64x32xf32>
    %37 = arith.truncf %36 : vector<64x32xf32> to vector<64x32xbf16>
    %38 = vector.extract_strided_slice %16 {offsets = [0, 160], sizes = [64, 32], strides = [1, 1]} : vector<64x384xf32> to vector<64x32xf32>
    %39 = arith.truncf %38 : vector<64x32xf32> to vector<64x32xbf16>
    %40 = vector.extract_strided_slice %16 {offsets = [0, 288], sizes = [64, 32], strides = [1, 1]} : vector<64x384xf32> to vector<64x32xf32>
    %41 = arith.truncf %40 : vector<64x32xf32> to vector<64x32xbf16>
    %cst_11 = arith.constant dense<0.000000e+00> : vector<64x64xf32>
    %42 = tpu.matmul %37, %39, %cst_11 {dimension_numbers = #tpu.dot_dimension_numbers<[1], [1], [0], [0], [0, 0, 1, 0], [], []>} : vector<64x32xbf16>, vector<64x32xbf16>, vector<64x64xf32> -> vector<64x64xf32>
    %cst_12 = arith.constant dense<0xFF800000> : vector<64xf32>
    %43 = vector.multi_reduction <maximumf>, %42, %cst_12 [1] : vector<64x64xf32> to vector<64xf32>
    %44 = vector.shape_cast %43 : vector<64xf32> to vector<64x1xf32>
    %45 = vector.broadcast %44 : vector<64x1xf32> to vector<64x64xf32>
    %46 = arith.subf %42, %45 : vector<64x64xf32>
    %47 = math.exp %46 : vector<64x64xf32>
    %cst_13 = arith.constant dense<0.000000e+00> : vector<64xf32>
    %48 = vector.multi_reduction <add>, %47, %cst_13 [1] : vector<64x64xf32> to vector<64xf32>
    %49 = vector.shape_cast %48 : vector<64xf32> to vector<64x1xf32>
    %50 = tpu.reciprocal %49 {approx = true} : vector<64x1xf32> -> vector<64x1xf32>
    %51 = vector.broadcast %50 : vector<64x1xf32> to vector<64x64xf32>
    %52 = arith.mulf %47, %51 : vector<64x64xf32>
    %53 = arith.truncf %52 : vector<64x64xf32> to vector<64x64xbf16>
    %cst_14 = arith.constant dense<0.000000e+00> : vector<64x32xf32>
    %54 = tpu.matmul %53, %41, %cst_14 {dimension_numbers = #tpu.dot_dimension_numbers<[1], [0], [0], [1], [0, 0, 1, 1], [], []>} : vector<64x64xbf16>, vector<64x32xbf16>, vector<64x32xf32> -> vector<64x32xf32>
    %55 = vector.extract_strided_slice %16 {offsets = [0, 64], sizes = [64, 32], strides = [1, 1]} : vector<64x384xf32> to vector<64x32xf32>
    %56 = arith.truncf %55 : vector<64x32xf32> to vector<64x32xbf16>
    %57 = vector.extract_strided_slice %16 {offsets = [0, 192], sizes = [64, 32], strides = [1, 1]} : vector<64x384xf32> to vector<64x32xf32>
    %58 = arith.truncf %57 : vector<64x32xf32> to vector<64x32xbf16>
    %59 = vector.extract_strided_slice %16 {offsets = [0, 320], sizes = [64, 32], strides = [1, 1]} : vector<64x384xf32> to vector<64x32xf32>
    %60 = arith.truncf %59 : vector<64x32xf32> to vector<64x32xbf16>
    %cst_15 = arith.constant dense<0.000000e+00> : vector<64x64xf32>
    %61 = tpu.matmul %56, %58, %cst_15 {dimension_numbers = #tpu.dot_dimension_numbers<[1], [1], [0], [0], [0, 0, 1, 0], [], []>} : vector<64x32xbf16>, vector<64x32xbf16>, vector<64x64xf32> -> vector<64x64xf32>
    %cst_16 = arith.constant dense<0xFF800000> : vector<64xf32>
    %62 = vector.multi_reduction <maximumf>, %61, %cst_16 [1] : vector<64x64xf32> to vector<64xf32>
    %63 = vector.shape_cast %62 : vector<64xf32> to vector<64x1xf32>
    %64 = vector.broadcast %63 : vector<64x1xf32> to vector<64x64xf32>
    %65 = arith.subf %61, %64 : vector<64x64xf32>
    %66 = math.exp %65 : vector<64x64xf32>
    %cst_17 = arith.constant dense<0.000000e+00> : vector<64xf32>
    %67 = vector.multi_reduction <add>, %66, %cst_17 [1] : vector<64x64xf32> to vector<64xf32>
    %68 = vector.shape_cast %67 : vector<64xf32> to vector<64x1xf32>
    %69 = tpu.reciprocal %68 {approx = true} : vector<64x1xf32> -> vector<64x1xf32>
    %70 = vector.broadcast %69 : vector<64x1xf32> to vector<64x64xf32>
    %71 = arith.mulf %66, %70 : vector<64x64xf32>
    %72 = arith.truncf %71 : vector<64x64xf32> to vector<64x64xbf16>
    %cst_18 = arith.constant dense<0.000000e+00> : vector<64x32xf32>
    %73 = tpu.matmul %72, %60, %cst_18 {dimension_numbers = #tpu.dot_dimension_numbers<[1], [0], [0], [1], [0, 0, 1, 1], [], []>} : vector<64x64xbf16>, vector<64x32xbf16>, vector<64x32xf32> -> vector<64x32xf32>
    %74 = vector.extract_strided_slice %16 {offsets = [0, 96], sizes = [64, 32], strides = [1, 1]} : vector<64x384xf32> to vector<64x32xf32>
    %75 = arith.truncf %74 : vector<64x32xf32> to vector<64x32xbf16>
    %76 = vector.extract_strided_slice %16 {offsets = [0, 224], sizes = [64, 32], strides = [1, 1]} : vector<64x384xf32> to vector<64x32xf32>
    %77 = arith.truncf %76 : vector<64x32xf32> to vector<64x32xbf16>
    %78 = vector.extract_strided_slice %16 {offsets = [0, 352], sizes = [64, 32], strides = [1, 1]} : vector<64x384xf32> to vector<64x32xf32>
    %79 = arith.truncf %78 : vector<64x32xf32> to vector<64x32xbf16>
    %cst_19 = arith.constant dense<0.000000e+00> : vector<64x64xf32>
    %80 = tpu.matmul %75, %77, %cst_19 {dimension_numbers = #tpu.dot_dimension_numbers<[1], [1], [0], [0], [0, 0, 1, 0], [], []>} : vector<64x32xbf16>, vector<64x32xbf16>, vector<64x64xf32> -> vector<64x64xf32>
    %cst_20 = arith.constant dense<0xFF800000> : vector<64xf32>
    %81 = vector.multi_reduction <maximumf>, %80, %cst_20 [1] : vector<64x64xf32> to vector<64xf32>
    %82 = vector.shape_cast %81 : vector<64xf32> to vector<64x1xf32>
    %83 = vector.broadcast %82 : vector<64x1xf32> to vector<64x64xf32>
    %84 = arith.subf %80, %83 : vector<64x64xf32>
    %85 = math.exp %84 : vector<64x64xf32>
    %cst_21 = arith.constant dense<0.000000e+00> : vector<64xf32>
    %86 = vector.multi_reduction <add>, %85, %cst_21 [1] : vector<64x64xf32> to vector<64xf32>
    %87 = vector.shape_cast %86 : vector<64xf32> to vector<64x1xf32>
    %88 = tpu.reciprocal %87 {approx = true} : vector<64x1xf32> -> vector<64x1xf32>
    %89 = vector.broadcast %88 : vector<64x1xf32> to vector<64x64xf32>
    %90 = arith.mulf %85, %89 : vector<64x64xf32>
    %91 = arith.truncf %90 : vector<64x64xf32> to vector<64x64xbf16>
    %cst_22 = arith.constant dense<0.000000e+00> : vector<64x32xf32>
    %92 = tpu.matmul %91, %79, %cst_22 {dimension_numbers = #tpu.dot_dimension_numbers<[1], [0], [0], [1], [0, 0, 1, 1], [], []>} : vector<64x64xbf16>, vector<64x32xbf16>, vector<64x32xf32> -> vector<64x32xf32>
    %93 = tpu.concatenate %35, %54, %73, %92 in 1 : vector<64x32xf32>, vector<64x32xf32>, vector<64x32xf32>, vector<64x32xf32> -> vector<64x128xf32>
    %94 = arith.truncf %93 : vector<64x128xf32> to vector<64x128xbf16>
    %95 = arith.index_cast %arg1 : i32 to index
    %c0_23 = arith.constant 0 : index
    %c0_24 = arith.constant 0 : index
    %96 = vector.load %arg9[%95, %c0_23, %c0_24] : memref<2x128x128xbf16, #tpu.memory_space<vmem>>, vector<1x128x128xbf16>
    %97 = vector.shape_cast %96 : vector<1x128x128xbf16> to vector<128x128xbf16>
    %cst_25 = arith.constant dense<0.000000e+00> : vector<64x128xf32>
    %98 = tpu.matmul %94, %97, %cst_25 {dimension_numbers = #tpu.dot_dimension_numbers<[1], [0], [0], [1], [0, 0, 1, 1], [], []>} : vector<64x128xbf16>, vector<128x128xbf16>, vector<64x128xf32> -> vector<64x128xf32>
    %99 = arith.addf %4, %98 : vector<64x128xf32>
    %100 = arith.index_cast %arg1 : i32 to index
    %c0_26 = arith.constant 0 : index
    %c0_27 = arith.constant 0 : index
    %101 = vector.load %arg10[%100, %c0_26, %c0_27] : memref<2x1x128xf32, #tpu.memory_space<vmem>>, vector<1x1x128xf32>
    %102 = vector.shape_cast %101 : vector<1x1x128xf32> to vector<1x128xf32>
    %103 = vector.broadcast %102 : vector<1x128xf32> to vector<64x128xf32>
    %104 = arith.addf %99, %103 : vector<64x128xf32>
    %105 = arith.truncf %104 : vector<64x128xf32> to vector<64x128xbf16>
    %106 = arith.index_cast %arg1 : i32 to index
    %c0_28 = arith.constant 0 : index
    %c0_29 = arith.constant 0 : index
    %107 = vector.load %arg11[%106, %c0_28, %c0_29] : memref<2x128x128xbf16, #tpu.memory_space<vmem>>, vector<1x128x128xbf16>
    %108 = vector.shape_cast %107 : vector<1x128x128xbf16> to vector<128x128xbf16>
    %cst_30 = arith.constant dense<0.000000e+00> : vector<64x128xf32>
    %109 = tpu.matmul %105, %108, %cst_30 {dimension_numbers = #tpu.dot_dimension_numbers<[1], [0], [0], [1], [0, 0, 1, 1], [], []>} : vector<64x128xbf16>, vector<128x128xbf16>, vector<64x128xf32> -> vector<64x128xf32>
    %110 = arith.addf %104, %109 : vector<64x128xf32>
    %111 = vector.shape_cast %110 : vector<64x128xf32> to vector<1x64x128xf32>
    %c0_31 = arith.constant 0 : index
    %c0_32 = arith.constant 0 : index
    %c0_33 = arith.constant 0 : index
    %112 = vector.load %arg12[%c0_31, %c0_32, %c0_33] : memref<1x64x128xf32, #tpu.memory_space<vmem>>, vector<1x64x128xf32>
    tpu.vector_store %arg12[%c0_31, %c0_32, %c0_33], %111 {strides = array<i32>} : memref<1x64x128xf32, #tpu.memory_space<vmem>>, vector<1x64x128xf32>,
    return
  }
  func.func @transform_0(%arg0: i32, %arg1: i32) -> (i32, i32, i32) {
    %c0_i32 = arith.constant 0 : i32
    %c0_i32_0 = arith.constant 0 : i32
    %c0_i32_1 = arith.constant 0 : i32
    return %arg0, %c0_i32, %c0_i32_0 : i32, i32, i32
  }
  func.func @transform_1(%arg0: i32, %arg1: i32) -> (i32, i32) {
    %c0_i32 = arith.constant 0 : i32
    %c0_i32_0 = arith.constant 0 : i32
    %c0_i32_1 = arith.constant 0 : i32
    return %c0_i32, %c0_i32_0 : i32, i32
  }
  func.func @transform_2(%arg0: i32, %arg1: i32) -> (i32, i32) {
    %c0_i32 = arith.constant 0 : i32
    %c0_i32_0 = arith.constant 0 : i32
    %c0_i32_1 = arith.constant 0 : i32
    return %c0_i32, %c0_i32_0 : i32, i32
  }
  func.func @transform_3(%arg0: i32, %arg1: i32) -> (i32, i32) {
    %c0_i32 = arith.constant 0 : i32
    %c0_i32_0 = arith.constant 0 : i32
    %c0_i32_1 = arith.constant 0 : i32
    return %c0_i32, %c0_i32_0 : i32, i32
  }
  func.func @transform_4(%arg0: i32, %arg1: i32) -> (i32, i32) {
    %c0_i32 = arith.constant 0 : i32
    %c0_i32_0 = arith.constant 0 : i32
    %c0_i32_1 = arith.constant 0 : i32
    return %c0_i32, %c0_i32_0 : i32, i32
  }
  func.func @transform_5(%arg0: i32, %arg1: i32) -> (i32, i32, i32) {
    %c0_i32 = arith.constant 0 : i32
    %c0_i32_0 = arith.constant 0 : i32
    %c0_i32_1 = arith.constant 0 : i32
    %c0_i32_2 = arith.constant 0 : i32
    return %c0_i32, %c0_i32_0, %c0_i32_1 : i32, i32, i32
  }
  func.func @transform_6(%arg0: i32, %arg1: i32) -> (i32, i32, i32) {
    %c0_i32 = arith.constant 0 : i32
    %c0_i32_0 = arith.constant 0 : i32
    %c0_i32_1 = arith.constant 0 : i32
    %c0_i32_2 = arith.constant 0 : i32
    return %c0_i32, %c0_i32_0, %c0_i32_1 : i32, i32, i32
  }
  func.func @transform_7(%arg0: i32, %arg1: i32) -> (i32, i32, i32) {
    %c0_i32 = arith.constant 0 : i32
    %c0_i32_0 = arith.constant 0 : i32
    %c0_i32_1 = arith.constant 0 : i32
    %c0_i32_2 = arith.constant 0 : i32
    return %c0_i32, %c0_i32_0, %c0_i32_1 : i32, i32, i32
  }
  func.func @transform_8(%arg0: i32, %arg1: i32) -> (i32, i32, i32) {
    %c0_i32 = arith.constant 0 : i32
    %c0_i32_0 = arith.constant 0 : i32
    %c0_i32_1 = arith.constant 0 : i32
    %c0_i32_2 = arith.constant 0 : i32
    return %c0_i32, %c0_i32_0, %c0_i32_1 : i32, i32, i32
  }
  func.func @transform_9(%arg0: i32, %arg1: i32) -> (i32, i32, i32) {
    %c0_i32 = arith.constant 0 : i32
    %c0_i32_0 = arith.constant 0 : i32
    %c0_i32_1 = arith.constant 0 : i32
    %c0_i32_2 = arith.constant 0 : i32
    return %c0_i32, %c0_i32_0, %c0_i32_1 : i32, i32, i32
  }
  func.func @transform_10(%arg0: i32, %arg1: i32) -> (i32, i32, i32) {
    %c0_i32 = arith.constant 0 : i32
    %c0_i32_0 = arith.constant 0 : i32
    %c0_i32_1 = arith.constant 0 : i32
    return %arg0, %c0_i32, %c0_i32_0 : i32, i32, i32
  }
}

</mosaic_0001>

<llo_original>
// kernel: tpu_custom_call.1
$region0: #{tpu_custom_call.1}
  #allocation0 [shape = 'u32[]', space=smem, size = 0x4, offset = 0x4, fixed_abs, tag = 'smem constant byte address 0x4 - core index']
  #allocation1 [shape = 'u32[144,128]{1,0:T(1,128)}', space=vmem, size = 0x12000, scoped, tag = 'internal scratch']
  %s0 = inlined_call_operand.vmem [shape: f32[2,64,32], index: 0, kind: input, shape index: {}]
  %s1 = inlined_call_operand.vmem [shape: bf16[32,128], index: 1, kind: input, shape index: {}]
  %s2 = inlined_call_operand.vmem [shape: f32[1,128], index: 2, kind: input, shape index: {}]
  %s3 = inlined_call_operand.vmem [shape: bf16[128,128], index: 3, kind: input, shape index: {}]
  %s4 = inlined_call_operand.vmem [shape: f32[1,128], index: 4, kind: input, shape index: {}]
  %s5 = inlined_call_operand.hbm [shape: bf16[2,128,384], index: 5, kind: input, shape index: {}]
  %s6 = inlined_call_operand.vmem [shape: f32[2,1,384], index: 6, kind: input, shape index: {}]
  %s7 = inlined_call_operand.vmem [shape: bf16[2,128,128], index: 7, kind: input, shape index: {}]
  %s8 = inlined_call_operand.vmem [shape: f32[2,1,128], index: 8, kind: input, shape index: {}]
  %s9 = inlined_call_operand.hbm [shape: bf16[2,128,128], index: 9, kind: input, shape index: {}]
  %s10 = inlined_call_operand.hbm [shape: f32[2,64,128], index: 10, kind: output, shape index: {}]
  %s11 = sld [smem:[#allocation0]]
  $region85: #{tpu_custom_call.1} parent=0
    _
  %s13 = ssub.s32 1, %s11
  %s14 = scalar_select 0, %s13, %s11
  $region1: #{tpu_custom_call.1} parent=0
    #allocation2 [shape = 'u8[196608]{0}', space=vmem, size = 0x30000, scoped, tag = 'input window, operand 5, single buffered']
    #allocation3 [shape = 's32[2]{0}', space=sflag, size = 0x8, scoped, tag = 'scoped memory for tpu_custom_call.1']
    #allocation4 [shape = 's32[2]{0}', space=sflag, size = 0x8, scoped, tag = 'scoped memory for tpu_custom_call.1']
    #allocation5 [shape = 'u8[65536]{0}', space=vmem, size = 0x10000, scoped, tag = 'input window, operand 9, single buffered']
    #allocation6 [shape = 's32[1]{0}', space=sflag, size = 0x4, scoped, tag = 'scoped memory for tpu_custom_call.1']
    #allocation7 [shape = 'u8[65536]{0}', space=vmem, size = 0x10000, scoped, tag = 'output window, operand 0']
    %15 = vsyncpa [#allocation3], 0
    %16 = vsyncpa [#allocation6], 0
    %17 = vsyncpa [#allocation4], 0
    %s18 = scalar_lea.sflag [#allocation4], 1
    %19 = vsyncpa %s18, 0
    loop: start=0, step=1, limit=6
    $region2: #{tpu_custom_call.1} parent=1 // loop_pre_header
      _
    $region3: #{tpu_custom_call.1} parent=1 // loop_header
      %s21 = sphi 0, %s25
      %p22 = scmp.ge.s32.totalorder %s21, 6
      %s28 = sphi 0, %s40
      %s29 = sphi 0, %s36
      %s30 = sphi 0, %s28
      %s31 = sphi 0, %s29
      %s32 = sphi 0, %s30
      %s33 = sphi 0, %s31
      %s43 = sphi 0, %s45
      %s46 = sphi 0, %s43
      %s47 = sphi 0, %s46
      %s63 = sphi 0, %s47
      %s67 = sphi 0, %s67
      %s69 = sphi 0, %s67
      %s70 = sphi 0, %s69
      %s84 = sphi 0, %s70
      %s88 = sphi 0, %s88
      %s90 = sphi 0, %s88
      %s91 = sphi 0, %s90
      %s105 = sphi 0, %s91
      %s109 = sphi 0, %s109
      %s111 = sphi 0, %s109
      %s112 = sphi 0, %s111
      %s126 = sphi 0, %s112
      %s130 = sphi 0, %s130
      %s132 = sphi 0, %s130
      %s133 = sphi 0, %s132
      %s147 = sphi 0, %s133
      %s151 = sphi 0, %s151
      %s153 = sphi 0, %s151
      %s154 = sphi 0, %s153
      %s168 = sphi 0, %s154
      %s172 = sphi 0, %s172
      %s174 = sphi 0, %s172
      %s175 = sphi 0, %s174
      %s189 = sphi 0, %s175
      %s193 = sphi 0, %s193
      %s195 = sphi 0, %s193
      %s196 = sphi 0, %s195
      %s210 = sphi 0, %s196
      %s214 = sphi 0, %s214
      %s216 = sphi 0, %s214
      %s217 = sphi 0, %s216
      %s231 = sphi 0, %s217
      %s235 = sphi 0, %s235
      %s237 = sphi 0, %s235
      %s238 = sphi 0, %s237
      %s252 = sphi 0, %s238
      %s258 = sphi 0, %s260
      %s261 = sphi 0, %s258
      %s262 = sphi 0, %s261
      %s278 = sphi 0, %s262
    $region4: #{tpu_custom_call.1} parent=1 // loop_header_branch
      %24 = sbr.rel (%p22) target = $region8
    $region5: #{tpu_custom_call.1} parent=1 // loop_body
      %s26 = ssub.s32 %s21, 1
      %s27 = ssub.s32 %s21, 2
      %s34 = sadd.s32 1, %s29
      %p35 = scmp.ge.s32.totalorder %s34, 2
      %s36 = scalar_select %p35, 0, %s34
      %s37 = sadd.s32 1, %s28
      %s38 = scalar_select %p35, %s37, %s28
      %p39 = scmp.ge.s32.totalorder %s38, 2
      %s40 = scalar_select %p39, 0, %s38
      %s41 = ssub.s32 %s28, %s40
      %p42 = scmp.eq.s32.totalorder %s41, 0
      %s44 = sadd.s32 %s43, 1
      %s45 = scalar_select %p42, %s43, %s44
      %p48 = pneg %p42
      %p49 = scmp.eq.s32.totalorder %s21, 3
      %p50 = por %p48, %p49
      %p51 = scmp.ne.s32.totalorder %s43, %s46
      %p52 = scmp.eq.s32.totalorder %s21, 0
      %p53 = por %p51, %p52
      %p54 = scmp.ne.s32.totalorder %s43, %s46
      %p55 = scmp.eq.s32.totalorder %s26, 3
      %p56 = por %p54, %p55
      %p57 = scmp.ne.s32.totalorder %s46, %s47
      %p58 = scmp.eq.s32.totalorder %s26, 0
      %p59 = por %p57, %p58
      %p60 = scmp.ne.s32.totalorder %s46, %s47
      %p61 = scmp.eq.s32.totalorder %s27, 3
      %p62 = por %p60, %p61
      %p64 = scmp.ne.s32.totalorder %s47, %s63
      %p65 = scmp.eq.s32.totalorder %s27, 0
      %p66 = por %p64, %p65
      %s68 = sadd.s32 %s67, 1
      %p71 = scmp.eq.s32.totalorder %s21, 3
      %p72 = scmp.ne.s32.totalorder %s67, %s69
      %p73 = scmp.eq.s32.totalorder %s21, 0
      %p74 = por %p72, %p73
      %p75 = scmp.ne.s32.totalorder %s67, %s69
      %p76 = scmp.eq.s32.totalorder %s26, 3
      %p77 = por %p75, %p76
      %p78 = scmp.ne.s32.totalorder %s69, %s70
      %p79 = scmp.eq.s32.totalorder %s26, 0
      %p80 = por %p78, %p79
      %p81 = scmp.ne.s32.totalorder %s69, %s70
      %p82 = scmp.eq.s32.totalorder %s27, 3
      %p83 = por %p81, %p82
      %p85 = scmp.ne.s32.totalorder %s70, %s84
      %p86 = scmp.eq.s32.totalorder %s27, 0
      %p87 = por %p85, %p86
      %s89 = sadd.s32 %s88, 1
      %p92 = scmp.eq.s32.totalorder %s21, 3
      %p93 = scmp.ne.s32.totalorder %s88, %s90
      %p94 = scmp.eq.s32.totalorder %s21, 0
      %p95 = por %p93, %p94
      %p96 = scmp.ne.s32.totalorder %s88, %s90
      %p97 = scmp.eq.s32.totalorder %s26, 3
      %p98 = por %p96, %p97
      %p99 = scmp.ne.s32.totalorder %s90, %s91
      %p100 = scmp.eq.s32.totalorder %s26, 0
      %p101 = por %p99, %p100
      %p102 = scmp.ne.s32.totalorder %s90, %s91
      %p103 = scmp.eq.s32.totalorder %s27, 3
      %p104 = por %p102, %p103
      %p106 = scmp.ne.s32.totalorder %s91, %s105
      %p107 = scmp.eq.s32.totalorder %s27, 0
      %p108 = por %p106, %p107
      %s110 = sadd.s32 %s109, 1
      %p113 = scmp.eq.s32.totalorder %s21, 3
      %p114 = scmp.ne.s32.totalorder %s109, %s111
      %p115 = scmp.eq.s32.totalorder %s21, 0
      %p116 = por %p114, %p115
      %p117 = scmp.ne.s32.totalorder %s109, %s111
      %p118 = scmp.eq.s32.totalorder %s26, 3
      %p119 = por %p117, %p118
      %p120 = scmp.ne.s32.totalorder %s111, %s112
      %p121 = scmp.eq.s32.totalorder %s26, 0
      %p122 = por %p120, %p121
      %p123 = scmp.ne.s32.totalorder %s111, %s112
      %p124 = scmp.eq.s32.totalorder %s27, 3
      %p125 = por %p123, %p124
      %p127 = scmp.ne.s32.totalorder %s112, %s126
      %p128 = scmp.eq.s32.totalorder %s27, 0
      %p129 = por %p127, %p128
      %s131 = sadd.s32 %s130, 1
      %p134 = scmp.eq.s32.totalorder %s21, 3
      %p135 = scmp.ne.s32.totalorder %s130, %s132
      %p136 = scmp.eq.s32.totalorder %s21, 0
      %p137 = por %p135, %p136
      %p138 = scmp.ne.s32.totalorder %s130, %s132
      %p139 = scmp.eq.s32.totalorder %s26, 3
      %p140 = por %p138, %p139
      %p141 = scmp.ne.s32.totalorder %s132, %s133
      %p142 = scmp.eq.s32.totalorder %s26, 0
      %p143 = por %p141, %p142
      %p144 = scmp.ne.s32.totalorder %s132, %s133
      %p145 = scmp.eq.s32.totalorder %s27, 3
      %p146 = por %p144, %p145
      %p148 = scmp.ne.s32.totalorder %s133, %s147
      %p149 = scmp.eq.s32.totalorder %s27, 0
      %p150 = por %p148, %p149
      %s152 = sadd.s32 %s151, 1
      %p155 = scmp.eq.s32.totalorder %s21, 3
      %p156 = scmp.ne.s32.totalorder %s151, %s153
      %p157 = scmp.eq.s32.totalorder %s21, 0
      %p158 = por %p156, %p157
      %p159 = scmp.ne.s32.totalorder %s151, %s153
      %p160 = scmp.eq.s32.totalorder %s26, 3
      %p161 = por %p159, %p160
      %p162 = scmp.ne.s32.totalorder %s153, %s154
      %p163 = scmp.eq.s32.totalorder %s26, 0
      %p164 = por %p162, %p163
      %p165 = scmp.ne.s32.totalorder %s153, %s154
      %p166 = scmp.eq.s32.totalorder %s27, 3
      %p167 = por %p165, %p166
      %p169 = scmp.ne.s32.totalorder %s154, %s168
      %p170 = scmp.eq.s32.totalorder %s27, 0
      %p171 = por %p169, %p170
      %s173 = sadd.s32 %s172, 1
      %p176 = scmp.eq.s32.totalorder %s21, 3
      %p177 = scmp.ne.s32.totalorder %s172, %s174
      %p178 = scmp.eq.s32.totalorder %s21, 0
      %p179 = por %p177, %p178
      %p180 = scmp.ne.s32.totalorder %s172, %s174
      %p181 = scmp.eq.s32.totalorder %s26, 3
      %p182 = por %p180, %p181
      %p183 = scmp.ne.s32.totalorder %s174, %s175
      %p184 = scmp.eq.s32.totalorder %s26, 0
      %p185 = por %p183, %p184
      %p186 = scmp.ne.s32.totalorder %s174, %s175
      %p187 = scmp.eq.s32.totalorder %s27, 3
      %p188 = por %p186, %p187
      %p190 = scmp.ne.s32.totalorder %s175, %s189
      %p191 = scmp.eq.s32.totalorder %s27, 0
      %p192 = por %p190, %p191
      %s194 = sadd.s32 %s193, 1
      %p197 = scmp.eq.s32.totalorder %s21, 3
      %p198 = scmp.ne.s32.totalorder %s193, %s195
      %p199 = scmp.eq.s32.totalorder %s21, 0
      %p200 = por %p198, %p199
      %p201 = scmp.ne.s32.totalorder %s193, %s195
      %p202 = scmp.eq.s32.totalorder %s26, 3
      %p203 = por %p201, %p202
      %p204 = scmp.ne.s32.totalorder %s195, %s196
      %p205 = scmp.eq.s32.totalorder %s26, 0
      %p206 = por %p204, %p205
      %p207 = scmp.ne.s32.totalorder %s195, %s196
      %p208 = scmp.eq.s32.totalorder %s27, 3
      %p209 = por %p207, %p208
      %p211 = scmp.ne.s32.totalorder %s196, %s210
      %p212 = scmp.eq.s32.totalorder %s27, 0
      %p213 = por %p211, %p212
      %s215 = sadd.s32 %s214, 1
      %p218 = scmp.eq.s32.totalorder %s21, 3
      %p219 = scmp.ne.s32.totalorder %s214, %s216
      %p220 = scmp.eq.s32.totalorder %s21, 0
      %p221 = por %p219, %p220
      %p222 = scmp.ne.s32.totalorder %s214, %s216
      %p223 = scmp.eq.s32.totalorder %s26, 3
      %p224 = por %p222, %p223
      %p225 = scmp.ne.s32.totalorder %s216, %s217
      %p226 = scmp.eq.s32.totalorder %s26, 0
      %p227 = por %p225, %p226
      %p228 = scmp.ne.s32.totalorder %s216, %s217
      %p229 = scmp.eq.s32.totalorder %s27, 3
      %p230 = por %p228, %p229
      %p232 = scmp.ne.s32.totalorder %s217, %s231
      %p233 = scmp.eq.s32.totalorder %s27, 0
      %p234 = por %p232, %p233
      %s236 = sadd.s32 %s235, 1
      %p239 = scmp.eq.s32.totalorder %s21, 3
      %p240 = scmp.ne.s32.totalorder %s235, %s237
      %p241 = scmp.eq.s32.totalorder %s21, 0
      %p242 = por %p240, %p241
      %p243 = scmp.ne.s32.totalorder %s235, %s237
      %p244 = scmp.eq.s32.totalorder %s26, 3
      %p245 = por %p243, %p244
      %p246 = scmp.ne.s32.totalorder %s237, %s238
      %p247 = scmp.eq.s32.totalorder %s26, 0
      %p248 = por %p246, %p247
      %p249 = scmp.ne.s32.totalorder %s237, %s238
      %p250 = scmp.eq.s32.totalorder %s27, 3
      %p251 = por %p249, %p250
      %p253 = scmp.ne.s32.totalorder %s238, %s252
      %p254 = scmp.eq.s32.totalorder %s27, 0
      %p255 = por %p253, %p254
      %s256 = ssub.s32 %s28, %s40
      %p257 = scmp.eq.s32.totalorder %s256, 0
      %s259 = sadd.s32 %s258, 1
      %s260 = scalar_select %p257, %s258, %s259
      %p263 = pneg %p257
      %p264 = scmp.eq.s32.totalorder %s21, 3
      %p265 = por %p263, %p264
      %p266 = scmp.ne.s32.totalorder %s258, %s261
      %p267 = scmp.eq.s32.totalorder %s21, 0
      %p268 = por %p266, %p267
      %p269 = scmp.ne.s32.totalorder %s258, %s261
      %p270 = scmp.eq.s32.totalorder %s26, 3
      %p271 = por %p269, %p270
      %p272 = scmp.ne.s32.totalorder %s261, %s262
      %p273 = scmp.eq.s32.totalorder %s26, 0
      %p274 = por %p272, %p273
      %p275 = scmp.ne.s32.totalorder %s261, %s262
      %p276 = scmp.eq.s32.totalorder %s27, 3
      %p277 = por %p275, %p276
      %p279 = scmp.ne.s32.totalorder %s262, %s278
      %p280 = scmp.eq.s32.totalorder %s27, 0
      %p281 = por %p279, %p280
      %p282 = scmp.le.s32.totalorder 1, %s21
      %p283 = scmp.lt.s32.totalorder %s21, 5
      %p284 = pnand %p282, %p283
      %p285 = pneg %p284
      // Predicated region
      $region9: #{tpu_custom_call.1} parent=5 // pred_check
        _
      $region10: #{tpu_custom_call.1} parent=5 // pred_check_branch
        %287 = sbr.rel (%p284) target = $region12
      $region11: #{tpu_custom_call.1} parent=5 // pred_region
        %s288 = ssub.s32 %s21, 1
        // Predicated region
        $region13: #{tpu_custom_call.1} parent=11 // pred_check
          %p289 = pneg %p80
        $region14: #{tpu_custom_call.1} parent=11 // pred_check_branch
          %291 = sbr.rel (%p289) target = $region16
        $region15: #{tpu_custom_call.1} parent=11 // pred_region
          _
        $region16: #{tpu_custom_call.1} parent=11 // pred_fallthru
          _
        // Predicated region
        $region17: #{tpu_custom_call.1} parent=11 // pred_check
          %p292 = pneg %p101
        $region18: #{tpu_custom_call.1} parent=11 // pred_check_branch
          %294 = sbr.rel (%p292) target = $region20
        $region19: #{tpu_custom_call.1} parent=11 // pred_region
          _
        $region20: #{tpu_custom_call.1} parent=11 // pred_fallthru
          _
        // Predicated region
        $region21: #{tpu_custom_call.1} parent=11 // pred_check
          %p295 = pneg %p122
        $region22: #{tpu_custom_call.1} parent=11 // pred_check_branch
          %297 = sbr.rel (%p295) target = $region24
        $region23: #{tpu_custom_call.1} parent=11 // pred_region
          _
        $region24: #{tpu_custom_call.1} parent=11 // pred_fallthru
          _
        // Predicated region
        $region25: #{tpu_custom_call.1} parent=11 // pred_check
          %p298 = pneg %p143
        $region26: #{tpu_custom_call.1} parent=11 // pred_check_branch
          %300 = sbr.rel (%p298) target = $region28
        $region27: #{tpu_custom_call.1} parent=11 // pred_region
          _
        $region28: #{tpu_custom_call.1} parent=11 // pred_fallthru
          _
        // Predicated region
        $region29: #{tpu_custom_call.1} parent=11 // pred_check
          %p301 = pneg %p164
        $region30: #{tpu_custom_call.1} parent=11 // pred_check_branch
          %303 = sbr.rel (%p301) target = $region32
        $region31: #{tpu_custom_call.1} parent=11 // pred_region
          %s305 = ssub.s32 6144, 6144
          %306 = vsyncadd [#allocation3], %s305
          %s307 = sshll.u32 [#allocation2], 4
          %s308 = int_to_ptr.vmem [resolvable:$true] %s307
          %313 = dma.hbm_to_vmem [thread:$0]  %s5, 6144, %s308, [#allocation3], 192, 192, 12
        $region32: #{tpu_custom_call.1} parent=11 // pred_fallthru
          _
        // Predicated region
        $region33: #{tpu_custom_call.1} parent=11 // pred_check
          %p314 = pneg %p185
        $region34: #{tpu_custom_call.1} parent=11 // pred_check_branch
          %316 = sbr.rel (%p314) target = $region36
        $region35: #{tpu_custom_call.1} parent=11 // pred_region
          _
        $region36: #{tpu_custom_call.1} parent=11 // pred_fallthru
          _
        // Predicated region
        $region37: #{tpu_custom_call.1} parent=11 // pred_check
          %p317 = pneg %p206
        $region38: #{tpu_custom_call.1} parent=11 // pred_check_branch
          %319 = sbr.rel (%p317) target = $region40
        $region39: #{tpu_custom_call.1} parent=11 // pred_region
          _
        $region40: #{tpu_custom_call.1} parent=11 // pred_fallthru
          _
        // Predicated region
        $region41: #{tpu_custom_call.1} parent=11 // pred_check
          %p320 = pneg %p227
        $region42: #{tpu_custom_call.1} parent=11 // pred_check_branch
          %322 = sbr.rel (%p320) target = $region44
        $region43: #{tpu_custom_call.1} parent=11 // pred_region
          _
        $region44: #{tpu_custom_call.1} parent=11 // pred_fallthru
          _
        // Predicated region
        $region45: #{tpu_custom_call.1} parent=11 // pred_check
          %p323 = pneg %p248
        $region46: #{tpu_custom_call.1} parent=11 // pred_check_branch
          %325 = sbr.rel (%p323) target = $region48
        $region47: #{tpu_custom_call.1} parent=11 // pred_region
          %s327 = ssub.s32 2048, 2048
          %328 = vsyncadd [#allocation6], %s327
          %s329 = sshll.u32 [#allocation5], 4
          %s330 = int_to_ptr.vmem [resolvable:$true] %s329
          %335 = dma.hbm_to_vmem [thread:$0]  %s9, 2048, %s330, [#allocation6], 64, 64, 4
        $region48: #{tpu_custom_call.1} parent=11 // pred_fallthru
          _
      $region12: #{tpu_custom_call.1} parent=5 // pred_fallthru
        _
      %p336 = scmp.lt.s32.totalorder %s21, 4
      // Predicated region
      $region49: #{tpu_custom_call.1} parent=5 // pred_check
        %p337 = pneg %p336
      $region50: #{tpu_custom_call.1} parent=5 // pred_check_branch
        %339 = sbr.rel (%p337) target = $region52
      $region51: #{tpu_custom_call.1} parent=5 // pred_region
        // Predicated region
        $region53: #{tpu_custom_call.1} parent=51 // pred_check
          %p340 = pneg %p53
        $region54: #{tpu_custom_call.1} parent=51 // pred_check_branch
          %342 = sbr.rel (%p340) target = $region56
        $region55: #{tpu_custom_call.1} parent=51 // pred_region
          %p343 = scmp.lt.s32.totalorder %s28, 1
          %s344 = scalar_select %p343, %s28, 1
          %s345 = smul.addr %s344, 8
          %s346 = smul.addr %s345, 8
          %s347 = scalar_lea.vmem %s0, %s346
        $region56: #{tpu_custom_call.1} parent=51 // pred_fallthru
          _
      $region52: #{tpu_custom_call.1} parent=5 // pred_fallthru
        _
      %p348 = scmp.le.s32.totalorder 1, %s21
      %p349 = scmp.lt.s32.totalorder %s21, 5
      %p350 = pnand %p348, %p349
      %p351 = pneg %p350
      // Predicated region
      $region57: #{tpu_custom_call.1} parent=5 // pred_check
        _
      $region58: #{tpu_custom_call.1} parent=5 // pred_check_branch
        %353 = sbr.rel (%p350) target = $region60
      $region59: #{tpu_custom_call.1} parent=5 // pred_region
        %s354 = ssub.s32 %s21, 1
        // Predicated region
        $region61: #{tpu_custom_call.1} parent=59 // pred_check
          %p355 = pneg %p164
        $region62: #{tpu_custom_call.1} parent=59 // pred_check_branch
          %357 = sbr.rel (%p355) target = $region64
        $region63: #{tpu_custom_call.1} parent=59 // pred_region
          %358 = dma.done [#allocation3], 6144
        $region64: #{tpu_custom_call.1} parent=59 // pred_fallthru
          _
        // Predicated region
        $region65: #{tpu_custom_call.1} parent=59 // pred_check
          %p359 = pneg %p248
        $region66: #{tpu_custom_call.1} parent=59 // pred_check_branch
          %361 = sbr.rel (%p359) target = $region68
        $region67: #{tpu_custom_call.1} parent=59 // pred_region
          %362 = dma.done [#allocation6], 2048
        $region68: #{tpu_custom_call.1} parent=59 // pred_fallthru
          _
        %p363 = scmp.lt.s32.totalorder %s30, 1
        %s364 = scalar_select %p363, %s30, 1
        %s365 = smul.addr %s364, 8
        %s366 = smul.addr %s365, 8
        %s367 = scalar_lea.vmem %s0, %s366
        %p368 = pneg %p59
        %p369 = pneg %p56
        %p370 = pneg %p80
        %p371 = pneg %p77
        %p372 = pneg %p101
        %p373 = pneg %p98
        %p374 = pneg %p122
        %p375 = pneg %p119
        %p376 = pneg %p143
        %p377 = pneg %p140
        %p378 = pneg %p164
        %p379 = pneg %p161
        %p380 = pneg %p185
        %p381 = pneg %p182
        %p382 = pneg %p206
        %p383 = pneg %p203
        %p384 = pneg %p227
        %p385 = pneg %p224
        %p386 = pneg %p248
        %p387 = pneg %p245
        %p388 = pneg %p274
        %p389 = pneg %p271
        %s390 = sand.u32 %s261, 1
        %s391 = scalar_lea.sflag [#allocation4], %s390
        %s392 = sand.u32 %s261, 1
        %s393 = smul.addr %s392, 64
        %s394 = scalar_lea.vmem [#allocation7], %s393
        %p395 = scmp.lt.s32.totalorder %s30, 1
        %s396 = scalar_select %p395, %s30, 1
        %s397 = smul.addr %s396, 8
        %s398 = smul.addr %s397, 8
        %s399 = scalar_lea.vmem %s0, %s398
        %p401 = scmp.eq.s32.totalorder %s31, 0
        // Predicated region
        $region69: #{tpu_custom_call.1} parent=59 // pred_check
          %p402 = pneg %p401
        $region70: #{tpu_custom_call.1} parent=59 // pred_check_branch
          %404 = sbr.rel (%p402) target = $region72
        $region71: #{tpu_custom_call.1} parent=59 // pred_region
          %v405 = vld [vmem:[%s399] sm:$0xff]
          %v406 = vld [vmem:[%s399 + $0x8] sm:$0xff]
          %v407 = vld [vmem:[%s399 + $0x10] sm:$0xff]
          %v408 = vld [vmem:[%s399 + $0x18] sm:$0xff]
          %v409 = vld [vmem:[%s399 + $0x20] sm:$0xff]
          %v410 = vld [vmem:[%s399 + $0x28] sm:$0xff]
          %v411 = vld [vmem:[%s399 + $0x30] sm:$0xff]
          %v412 = vld [vmem:[%s399 + $0x38] sm:$0xff]
          %v413 = vpack.c.bf16 %v406, %v405
          %v414 = vpack.c.bf16 %v408, %v407
          %v415 = vpack.c.bf16 %v410, %v409
          %v416 = vpack.c.bf16 %v412, %v411
          %v417 = vld [vmem:[%s1] sm:$0xf]
          %v418 = vld [vmem:[%s1 + $0x4] sm:$0xf]
          %v419 = vld [vmem:[%s1 + $0x8] sm:$0xf]
          %v420 = vld [vmem:[%s1 + $0xc] sm:$0xf]
          %v421 = vld [vmem:[%s2] sm:$0x1]
          %v423 = vlaneseq
          %v424 = vshrl.u32 %v423, 7
          %v425 = vsub.s32 0, %v424
          %v426 = vrot.slane %v421, %v425
          %v432 = vunpack.c.l.b16 %v417
          %v433 = vunpack.c.l.b16 %v418
          %v434 = vunpack.c.l.b16 %v419
          %v435 = vunpack.c.l.b16 %v420
          %v436 = vpack.c.b16 %v433, %v432
          %v437 = vpack.c.b16 %v435, %v434
          %vm440 = vcmask 261120
          %v442 = vsel %vm440, %v413, 0
          %v445 = vsel %vm440, %v414, 0
          %v448 = vsel %vm440, %v415, 0
          %v451 = vsel %vm440, %v416, 0
          %453 = vmatprep.subr.bf16.mxu0 0
          %454 = vmatpush1.bf16.msra.mxu0 %v436
          %455 = vmatprep.subr.bf16.mxu0 0
          %456 = vmatpush1.bf16.msra.mxu0 %v437
          %457 = vmatprep.subr.bf16.mxu0 0
          %458 = vmatpush1.bf16.msra.mxu0 0
          %459 = vmatprep.subr.bf16.mxu0 0
          %460 = vmatpush1.bf16.msra.mxu0 0
          %461 = vmatprep.subr.bf16.mxu0 0
          %462 = vmatpush1.bf16.msra.mxu0 0
          %463 = vmatprep.subr.bf16.mxu0 0
          %464 = vmatpush1.bf16.msra.mxu0 0
          %465 = vmatprep.subr.bf16.mxu0 0
          %466 = vmatpush1.bf16.msra.mxu0 0
          %467 = vmatprep.subr.bf16.mxu0 0
          %468 = vmatpush1.bf16.msra.mxu0 0
          %469 = vmatprep.subr.bf16.mxu0 0
          %470 = vmatpush1.bf16.msra.mxu0 0
          %471 = vmatprep.subr.bf16.mxu0 0
          %472 = vmatpush1.bf16.msra.mxu0 0
          %473 = vmatprep.subr.bf16.mxu0 0
          %474 = vmatpush1.bf16.msra.mxu0 0
          %475 = vmatprep.subr.bf16.mxu0 0
          %476 = vmatpush1.bf16.msra.mxu0 0
          %477 = vmatprep.subr.bf16.mxu0 0
          %478 = vmatpush1.bf16.msra.mxu0 0
          %479 = vmatprep.subr.bf16.mxu0 0
          %480 = vmatpush1.bf16.msra.mxu0 0
          %481 = vmatprep.subr.bf16.mxu0 0
          %482 = vmatpush1.bf16.msra.mxu0 0
          %483 = vmatprep.subr.bf16.mxu0 0
          %484 = vmatpush1.bf16.msra.mxu0 0
          %485 = vmatprep.mubr.bf16.mxu0 0
          %486 = vmatmul.mubr.bf16.gmra.mrb[0].mxu0 %v442
          %v487 = vpop.f32.mrb[0].mxu0
          %v488 = vadd.f32 %v426, %v487
          %v489 = vpop.f32.mrb[0].mxu0
          %v490 = vpop.f32.mrb[0].mxu0
          %v491 = vadd.f32 %v426, %v490
          %v492 = vpop.f32.mrb[0].mxu0
          %493 = vmatprep.mubr.bf16.mxu0 0
          %494 = vmatmul.mubr.bf16.gmra.mrb[0].mxu0 %v445
          %v495 = vpop.f32.mrb[0].mxu0
          %v496 = vadd.f32 %v426, %v495
          %v497 = vpop.f32.mrb[0].mxu0
          %v498 = vpop.f32.mrb[0].mxu0
          %v499 = vadd.f32 %v426, %v498
          %v500 = vpop.f32.mrb[0].mxu0
          %501 = vmatprep.mubr.bf16.mxu0 0
          %502 = vmatmul.mubr.bf16.gmra.mrb[0].mxu0 %v448
          %v503 = vpop.f32.mrb[0].mxu0
          %v504 = vadd.f32 %v426, %v503
          %v505 = vpop.f32.mrb[0].mxu0
          %v506 = vpop.f32.mrb[0].mxu0
          %v507 = vadd.f32 %v426, %v506
          %v508 = vpop.f32.mrb[0].mxu0
          %509 = vmatprep.mubr.bf16.mxu0 0
          %510 = vmatmul.mubr.bf16.gmra.mrb[0].mxu0 %v451
          %v511 = vpop.f32.mrb[0].mxu0
          %v512 = vadd.f32 %v426, %v511
          %v513 = vpop.f32.mrb[0].mxu0
          %v514 = vpop.f32.mrb[0].mxu0
          %v515 = vadd.f32 %v426, %v514
          %v516 = vpop.f32.mrb[0].mxu0
          %517 = vdwg.mxu0
          %v518 = vsub.f32 0.0, %v488
          %v519 = vsub.f32 0.0, %v491
          %v520 = vsub.f32 0.0, %v496
          %v521 = vsub.f32 0.0, %v499
          %v522 = vsub.f32 0.0, %v504
          %v523 = vsub.f32 0.0, %v507
          %v524 = vsub.f32 0.0, %v512
          %v525 = vsub.f32 0.0, %v515
          %v526 = vmul.f32 %v518, 1.442695
          %v527 = vpow.pop %v526
          %v528 = vmul.f32 %v519, 1.442695
          %v529 = vpow.pop %v528
          %v530 = vmul.f32 %v520, 1.442695
          %v531 = vpow.pop %v530
          %v532 = vmul.f32 %v521, 1.442695
          %v533 = vpow.pop %v532
          %v534 = vmul.f32 %v522, 1.442695
          %v535 = vpow.pop %v534
          %v536 = vmul.f32 %v523, 1.442695
          %v537 = vpow.pop %v536
          %v538 = vmul.f32 %v524, 1.442695
          %v539 = vpow.pop %v538
          %v540 = vmul.f32 %v525, 1.442695
          %v541 = vpow.pop %v540
          %v542 = vadd.f32 %v527, 1.0
          %v543 = vadd.f32 %v529, 1.0
          %v544 = vadd.f32 %v531, 1.0
          %v545 = vadd.f32 %v533, 1.0
          %v546 = vadd.f32 %v535, 1.0
          %v547 = vadd.f32 %v537, 1.0
          %v548 = vadd.f32 %v539, 1.0
          %v549 = vadd.f32 %v541, 1.0
          %v550 = vrcp.pop %v542
          %v551 = vmul.f32 1.0, %v550
          %v552 = vrcp.pop %v543
          %v553 = vmul.f32 1.0, %v552
          %v554 = vrcp.pop %v544
          %v555 = vmul.f32 1.0, %v554
          %v556 = vrcp.pop %v545
          %v557 = vmul.f32 1.0, %v556
          %v558 = vrcp.pop %v546
          %v559 = vmul.f32 1.0, %v558
          %v560 = vrcp.pop %v547
          %v561 = vmul.f32 1.0, %v560
          %v562 = vrcp.pop %v548
          %v563 = vmul.f32 1.0, %v562
          %v564 = vrcp.pop %v549
          %v565 = vmul.f32 1.0, %v564
          %v566 = vmul.f32 %v488, %v551
          %v567 = vmul.f32 %v491, %v553
          %v568 = vmul.f32 %v496, %v555
          %v569 = vmul.f32 %v499, %v557
          %v570 = vmul.f32 %v504, %v559
          %v571 = vmul.f32 %v507, %v561
          %v572 = vmul.f32 %v512, %v563
          %v573 = vmul.f32 %v515, %v565
          %v574 = vpack.c.bf16 %v567, %v566
          %v575 = vpack.c.bf16 %v569, %v568
          %v576 = vpack.c.bf16 %v571, %v570
          %v577 = vpack.c.bf16 %v573, %v572
          %v578 = vld [vmem:[%s3] sm:$0xf]
          %v579 = vld [vmem:[%s3 + $0x4] sm:$0xf]
          %v580 = vld [vmem:[%s3 + $0x8] sm:$0xf]
          %v581 = vld [vmem:[%s3 + $0xc] sm:$0xf]
          %v582 = vld [vmem:[%s3 + $0x10] sm:$0xf]
          %v583 = vld [vmem:[%s3 + $0x14] sm:$0xf]
          %v584 = vld [vmem:[%s3 + $0x18] sm:$0xf]
          %v585 = vld [vmem:[%s3 + $0x1c] sm:$0xf]
          %v586 = vld [vmem:[%s3 + $0x20] sm:$0xf]
          %v587 = vld [vmem:[%s3 + $0x24] sm:$0xf]
          %v588 = vld [vmem:[%s3 + $0x28] sm:$0xf]
          %v589 = vld [vmem:[%s3 + $0x2c] sm:$0xf]
          %v590 = vld [vmem:[%s3 + $0x30] sm:$0xf]
          %v591 = vld [vmem:[%s3 + $0x34] sm:$0xf]
          %v592 = vld [vmem:[%s3 + $0x38] sm:$0xf]
          %v593 = vld [vmem:[%s3 + $0x3c] sm:$0xf]
          %v610 = vunpack.c.l.b16 %v578
          %v611 = vunpack.c.l.b16 %v579
          %v612 = vunpack.c.l.b16 %v580
          %v613 = vunpack.c.l.b16 %v581
          %v614 = vunpack.c.l.b16 %v582
          %v615 = vunpack.c.l.b16 %v583
          %v616 = vunpack.c.l.b16 %v584
          %v617 = vunpack.c.l.b16 %v585
          %v618 = vunpack.c.l.b16 %v586
          %v619 = vunpack.c.l.b16 %v587
          %v620 = vunpack.c.l.b16 %v588
          %v621 = vunpack.c.l.b16 %v589
          %v622 = vunpack.c.l.b16 %v590
          %v623 = vunpack.c.l.b16 %v591
          %v624 = vunpack.c.l.b16 %v592
          %v625 = vunpack.c.l.b16 %v593
          %v626 = vpack.c.b16 %v611, %v610
          %v627 = vpack.c.b16 %v613, %v612
          %v628 = vpack.c.b16 %v615, %v614
          %v629 = vpack.c.b16 %v617, %v616
          %v630 = vpack.c.b16 %v619, %v618
          %v631 = vpack.c.b16 %v621, %v620
          %v632 = vpack.c.b16 %v623, %v622
          %v633 = vpack.c.b16 %v625, %v624
          %642 = vmatprep.subr.bf16.mxu0 0
          %643 = vmatpush1.bf16.msra.mxu0 %v626
          %644 = vmatprep.subr.bf16.mxu0 0
          %645 = vmatpush1.bf16.msra.mxu0 %v627
          %646 = vmatprep.subr.bf16.mxu0 0
          %647 = vmatpush1.bf16.msra.mxu0 %v628
          %648 = vmatprep.subr.bf16.mxu0 0
          %649 = vmatpush1.bf16.msra.mxu0 %v629
          %650 = vmatprep.subr.bf16.mxu0 0
          %651 = vmatpush1.bf16.msra.mxu0 %v630
          %652 = vmatprep.subr.bf16.mxu0 0
          %653 = vmatpush1.bf16.msra.mxu0 %v631
          %654 = vmatprep.subr.bf16.mxu0 0
          %655 = vmatpush1.bf16.msra.mxu0 %v632
          %656 = vmatprep.subr.bf16.mxu0 0
          %657 = vmatpush1.bf16.msra.mxu0 %v633
          %658 = vmatprep.subr.bf16.mxu0 0
          %659 = vmatpush1.bf16.msra.mxu0 0
          %660 = vmatprep.subr.bf16.mxu0 0
          %661 = vmatpush1.bf16.msra.mxu0 0
          %662 = vmatprep.subr.bf16.mxu0 0
          %663 = vmatpush1.bf16.msra.mxu0 0
          %664 = vmatprep.subr.bf16.mxu0 0
          %665 = vmatpush1.bf16.msra.mxu0 0
          %666 = vmatprep.subr.bf16.mxu0 0
          %667 = vmatpush1.bf16.msra.mxu0 0
          %668 = vmatprep.subr.bf16.mxu0 0
          %669 = vmatpush1.bf16.msra.mxu0 0
          %670 = vmatprep.subr.bf16.mxu0 0
          %671 = vmatpush1.bf16.msra.mxu0 0
          %672 = vmatprep.subr.bf16.mxu0 0
          %673 = vmatpush1.bf16.msra.mxu0 0
          %674 = vmatprep.mubr.bf16.mxu0 0
          %675 = vmatmul.mubr.bf16.gmra.mrb[0].mxu0 %v574
          %v676 = vpop.f32.mrb[0].mxu0
          %v677 = vadd.f32 0.0, %v676
          %v678 = vpop.f32.mrb[0].mxu0
          %v679 = vpop.f32.mrb[0].mxu0
          %v680 = vadd.f32 0.0, %v679
          %v681 = vpop.f32.mrb[0].mxu0
          %682 = vmatprep.mubr.bf16.mxu0 0
          %683 = vmatmul.mubr.bf16.gmra.mrb[0].mxu0 %v575
          %v684 = vpop.f32.mrb[0].mxu0
          %v685 = vadd.f32 0.0, %v684
          %v686 = vpop.f32.mrb[0].mxu0
          %v687 = vpop.f32.mrb[0].mxu0
          %v688 = vadd.f32 0.0, %v687
          %v689 = vpop.f32.mrb[0].mxu0
          %690 = vmatprep.mubr.bf16.mxu0 0
          %691 = vmatmul.mubr.bf16.gmra.mrb[0].mxu0 %v576
          %v692 = vpop.f32.mrb[0].mxu0
          %v693 = vadd.f32 0.0, %v692
          %v694 = vpop.f32.mrb[0].mxu0
          %v695 = vpop.f32.mrb[0].mxu0
          %v696 = vadd.f32 0.0, %v695
          %v697 = vpop.f32.mrb[0].mxu0
          %698 = vmatprep.mubr.bf16.mxu0 0
          %699 = vmatmul.mubr.bf16.gmra.mrb[0].mxu0 %v577
          %v700 = vpop.f32.mrb[0].mxu0
          %v701 = vadd.f32 0.0, %v700
          %v702 = vpop.f32.mrb[0].mxu0
          %v703 = vpop.f32.mrb[0].mxu0
          %v704 = vadd.f32 0.0, %v703
          %v705 = vpop.f32.mrb[0].mxu0
          %706 = vdwg.mxu0
          %v707 = vadd.f32 %v566, %v677
          %v708 = vadd.f32 %v567, %v680
          %v709 = vadd.f32 %v568, %v685
          %v710 = vadd.f32 %v569, %v688
          %v711 = vadd.f32 %v570, %v693
          %v712 = vadd.f32 %v571, %v696
          %v713 = vadd.f32 %v572, %v701
          %v714 = vadd.f32 %v573, %v704
          %v715 = vld [vmem:[%s4] sm:$0x1]
          %v717 = vlaneseq
          %v718 = vshrl.u32 %v717, 7
          %v719 = vsub.s32 0, %v718
          %v720 = vrot.slane %v715, %v719
          %v722 = vadd.f32 %v707, %v720
          %v723 = vadd.f32 %v708, %v720
          %v724 = vadd.f32 %v709, %v720
          %v725 = vadd.f32 %v710, %v720
          %v726 = vadd.f32 %v711, %v720
          %v727 = vadd.f32 %v712, %v720
          %v728 = vadd.f32 %v713, %v720
          %v729 = vadd.f32 %v714, %v720
          %730 = vst [vmem:[%s394] sm:$0xff] %v722
          %731 = vst [vmem:[%s394 + $0x8] sm:$0xff] %v723
          %732 = vst [vmem:[%s394 + $0x10] sm:$0xff] %v724
          %733 = vst [vmem:[%s394 + $0x18] sm:$0xff] %v725
          %734 = vst [vmem:[%s394 + $0x20] sm:$0xff] %v726
          %735 = vst [vmem:[%s394 + $0x28] sm:$0xff] %v727
          %736 = vst [vmem:[%s394 + $0x30] sm:$0xff] %v728
          %737 = vst [vmem:[%s394 + $0x38] sm:$0xff] %v729
        $region72: #{tpu_custom_call.1} parent=59 // pred_fallthru
          _
        %v738 = vld [vmem:[%s394] sm:$0xff]
        %v739 = vld [vmem:[%s394 + $0x8] sm:$0xff]
        %v740 = vld [vmem:[%s394 + $0x10] sm:$0xff]
        %v741 = vld [vmem:[%s394 + $0x18] sm:$0xff]
        %v742 = vld [vmem:[%s394 + $0x20] sm:$0xff]
        %v743 = vld [vmem:[%s394 + $0x28] sm:$0xff]
        %v744 = vld [vmem:[%s394 + $0x30] sm:$0xff]
        %v745 = vld [vmem:[%s394 + $0x38] sm:$0xff]
        %v746 = vpack.c.bf16 %v739, %v738
        %v747 = vpack.c.bf16 %v741, %v740
        %v748 = vpack.c.bf16 %v743, %v742
        %v749 = vpack.c.bf16 %v745, %v744
        %s750 = smul.u32 %s31, 48
        %s751 = smul.addr %s750, 4
        %s752 = scalar_lea.vmem [#allocation2], %s751
        %v753 = vld [vmem:[%s752] sm:$0xff]
        %v754 = vld [vmem:[%s752 + $0x8] sm:$0xf]
        %v755 = vld [vmem:[%s752 + $0xc] sm:$0xff]
        %v756 = vld [vmem:[%s752 + $0x14] sm:$0xf]
        %v757 = vld [vmem:[%s752 + $0x18] sm:$0xff]
        %v758 = vld [vmem:[%s752 + $0x20] sm:$0xf]
        %v759 = vld [vmem:[%s752 + $0x24] sm:$0xff]
        %v760 = vld [vmem:[%s752 + $0x2c] sm:$0xf]
        %v761 = vld [vmem:[%s752 + $0x30] sm:$0xff]
        %v762 = vld [vmem:[%s752 + $0x38] sm:$0xf]
        %v763 = vld [vmem:[%s752 + $0x3c] sm:$0xff]
        %v764 = vld [vmem:[%s752 + $0x44] sm:$0xf]
        %v765 = vld [vmem:[%s752 + $0x48] sm:$0xff]
        %v766 = vld [vmem:[%s752 + $0x50] sm:$0xf]
        %v767 = vld [vmem:[%s752 + $0x54] sm:$0xff]
        %v768 = vld [vmem:[%s752 + $0x5c] sm:$0xf]
        %v769 = vld [vmem:[%s752 + $0x60] sm:$0xff]
        %v770 = vld [vmem:[%s752 + $0x68] sm:$0xf]
        %v771 = vld [vmem:[%s752 + $0x6c] sm:$0xff]
        %v772 = vld [vmem:[%s752 + $0x74] sm:$0xf]
        %v773 = vld [vmem:[%s752 + $0x78] sm:$0xff]
        %v774 = vld [vmem:[%s752 + $0x80] sm:$0xf]
        %v775 = vld [vmem:[%s752 + $0x84] sm:$0xff]
        %v776 = vld [vmem:[%s752 + $0x8c] sm:$0xf]
        %v777 = vld [vmem:[%s752 + $0x90] sm:$0xff]
        %v778 = vld [vmem:[%s752 + $0x98] sm:$0xf]
        %v779 = vld [vmem:[%s752 + $0x9c] sm:$0xff]
        %v780 = vld [vmem:[%s752 + $0xa4] sm:$0xf]
        %v781 = vld [vmem:[%s752 + $0xa8] sm:$0xff]
        %v782 = vld [vmem:[%s752 + $0xb0] sm:$0xf]
        %v783 = vld [vmem:[%s752 + $0xb4] sm:$0xff]
        %v784 = vld [vmem:[%s752 + $0xbc] sm:$0xf]
        %s785 = smul.u32 %s31, 3
        %s786 = scalar_lea.vmem %s6, %s785
        %v787 = vld [vmem:[%s786] sm:$0x7]
        %v789 = vlaneseq
        %v790 = vshrl.u32 %v789, 7
        %v791 = vsub.s32 0, %v790
        %v792 = vrot.slane %v787, %v791
        %v793 = vlaneseq
        %v794 = vshrl.u32 %v793, 7
        %v795 = vsub.s32 1, %v794
        %v796 = vrot.slane %v787, %v795
        %v797 = vlaneseq
        %v798 = vshrl.u32 %v797, 7
        %v799 = vsub.s32 2, %v798
        %v800 = vrot.slane %v787, %v799
        %v836 = vunpack.c.l.b16 %v753
        %v837 = vunpack.c.h.b16 %v753
        %v838 = vunpack.c.l.b16 %v754
        %v839 = vunpack.c.l.b16 %v755
        %v840 = vunpack.c.h.b16 %v755
        %v841 = vunpack.c.l.b16 %v756
        %v842 = vunpack.c.l.b16 %v757
        %v843 = vunpack.c.h.b16 %v757
        %v844 = vunpack.c.l.b16 %v758
        %v845 = vunpack.c.l.b16 %v759
        %v846 = vunpack.c.h.b16 %v759
        %v847 = vunpack.c.l.b16 %v760
        %v848 = vunpack.c.l.b16 %v761
        %v849 = vunpack.c.h.b16 %v761
        %v850 = vunpack.c.l.b16 %v762
        %v851 = vunpack.c.l.b16 %v763
        %v852 = vunpack.c.h.b16 %v763
        %v853 = vunpack.c.l.b16 %v764
        %v854 = vunpack.c.l.b16 %v765
        %v855 = vunpack.c.h.b16 %v765
        %v856 = vunpack.c.l.b16 %v766
        %v857 = vunpack.c.l.b16 %v767
        %v858 = vunpack.c.h.b16 %v767
        %v859 = vunpack.c.l.b16 %v768
        %v860 = vunpack.c.l.b16 %v769
        %v861 = vunpack.c.h.b16 %v769
        %v862 = vunpack.c.l.b16 %v770
        %v863 = vunpack.c.l.b16 %v771
        %v864 = vunpack.c.h.b16 %v771
        %v865 = vunpack.c.l.b16 %v772
        %v866 = vunpack.c.l.b16 %v773
        %v867 = vunpack.c.h.b16 %v773
        %v868 = vunpack.c.l.b16 %v774
        %v869 = vunpack.c.l.b16 %v775
        %v870 = vunpack.c.h.b16 %v775
        %v871 = vunpack.c.l.b16 %v776
        %v872 = vunpack.c.l.b16 %v777
        %v873 = vunpack.c.h.b16 %v777
        %v874 = vunpack.c.l.b16 %v778
        %v875 = vunpack.c.l.b16 %v779
        %v876 = vunpack.c.h.b16 %v779
        %v877 = vunpack.c.l.b16 %v780
        %v878 = vunpack.c.l.b16 %v781
        %v879 = vunpack.c.h.b16 %v781
        %v880 = vunpack.c.l.b16 %v782
        %v881 = vunpack.c.l.b16 %v783
        %v882 = vunpack.c.h.b16 %v783
        %v883 = vunpack.c.l.b16 %v784
        %v884 = vpack.c.b16 %v839, %v836
        %v885 = vpack.c.b16 %v840, %v837
        %v886 = vpack.c.b16 %v841, %v838
        %v887 = vpack.c.b16 %v845, %v842
        %v888 = vpack.c.b16 %v846, %v843
        %v889 = vpack.c.b16 %v847, %v844
        %v890 = vpack.c.b16 %v851, %v848
        %v891 = vpack.c.b16 %v852, %v849
        %v892 = vpack.c.b16 %v853, %v850
        %v893 = vpack.c.b16 %v857, %v854
        %v894 = vpack.c.b16 %v858, %v855
        %v895 = vpack.c.b16 %v859, %v856
        %v896 = vpack.c.b16 %v863, %v860
        %v897 = vpack.c.b16 %v864, %v861
        %v898 = vpack.c.b16 %v865, %v862
        %v899 = vpack.c.b16 %v869, %v866
        %v900 = vpack.c.b16 %v870, %v867
        %v901 = vpack.c.b16 %v871, %v868
        %v902 = vpack.c.b16 %v875, %v872
        %v903 = vpack.c.b16 %v876, %v873
        %v904 = vpack.c.b16 %v877, %v874
        %v905 = vpack.c.b16 %v881, %v878
        %v906 = vpack.c.b16 %v882, %v879
        %v907 = vpack.c.b16 %v883, %v880
        %932 = vmatprep.subr.bf16.mxu0 %v885
        %933 = vmatpush1.bf16.msra.mxu0 %v884
        %934 = vmatprep.subr.bf16.mxu0 %v888
        %935 = vmatpush1.bf16.msra.mxu0 %v887
        %936 = vmatprep.subr.bf16.mxu0 %v891
        %937 = vmatpush1.bf16.msra.mxu0 %v890
        %938 = vmatprep.subr.bf16.mxu0 %v894
        %939 = vmatpush1.bf16.msra.mxu0 %v893
        %940 = vmatprep.subr.bf16.mxu0 %v897
        %941 = vmatpush1.bf16.msra.mxu0 %v896
        %942 = vmatprep.subr.bf16.mxu0 %v900
        %943 = vmatpush1.bf16.msra.mxu0 %v899
        %944 = vmatprep.subr.bf16.mxu0 %v903
        %945 = vmatpush1.bf16.msra.mxu0 %v902
        %946 = vmatprep.subr.bf16.mxu0 %v906
        %947 = vmatpush1.bf16.msra.mxu0 %v905
        %948 = vmatprep.subr.bf16.mxu0 0
        %949 = vmatpush1.bf16.msra.mxu0 0
        %950 = vmatprep.subr.bf16.mxu0 0
        %951 = vmatpush1.bf16.msra.mxu0 0
        %952 = vmatprep.subr.bf16.mxu0 0
        %953 = vmatpush1.bf16.msra.mxu0 0
        %954 = vmatprep.subr.bf16.mxu0 0
        %955 = vmatpush1.bf16.msra.mxu0 0
        %956 = vmatprep.subr.bf16.mxu0 0
        %957 = vmatpush1.bf16.msra.mxu0 0
        %958 = vmatprep.subr.bf16.mxu0 0
        %959 = vmatpush1.bf16.msra.mxu0 0
        %960 = vmatprep.subr.bf16.mxu0 0
        %961 = vmatpush1.bf16.msra.mxu0 0
        %962 = vmatprep.subr.bf16.mxu0 0
        %963 = vmatpush1.bf16.msra.mxu0 0
        %964 = vmatprep.mubr.bf16.mxu0 0
        %965 = vmatmul.mubr.bf16.gmra.mrb[0].mxu0 %v746
        %v966 = vpop.f32.mrb[0].mxu0
        %v967 = vadd.f32 %v792, %v966
        %v968 = vpop.f32.mrb[0].mxu0
        %v969 = vadd.f32 %v796, %v968
        %v970 = vpop.f32.mrb[0].mxu0
        %v971 = vadd.f32 %v792, %v970
        %v972 = vpop.f32.mrb[0].mxu0
        %v973 = vadd.f32 %v796, %v972
        %974 = vmatprep.mubr.bf16.mxu0 0
        %975 = vmatmul.mubr.bf16.gmra.mrb[0].mxu0 %v747
        %v976 = vpop.f32.mrb[0].mxu0
        %v977 = vadd.f32 %v792, %v976
        %v978 = vpop.f32.mrb[0].mxu0
        %v979 = vadd.f32 %v796, %v978
        %v980 = vpop.f32.mrb[0].mxu0
        %v981 = vadd.f32 %v792, %v980
        %v982 = vpop.f32.mrb[0].mxu0
        %v983 = vadd.f32 %v796, %v982
        %984 = vmatprep.mubr.bf16.mxu0 0
        %985 = vmatmul.mubr.bf16.gmra.mrb[0].mxu0 %v748
        %v986 = vpop.f32.mrb[0].mxu0
        %v987 = vadd.f32 %v792, %v986
        %v988 = vpop.f32.mrb[0].mxu0
        %v989 = vadd.f32 %v796, %v988
        %v990 = vpop.f32.mrb[0].mxu0
        %v991 = vadd.f32 %v792, %v990
        %v992 = vpop.f32.mrb[0].mxu0
        %v993 = vadd.f32 %v796, %v992
        %994 = vmatprep.mubr.bf16.mxu0 0
        %995 = vmatmul.mubr.bf16.gmra.mrb[0].mxu0 %v749
        %v996 = vpop.f32.mrb[0].mxu0
        %v997 = vadd.f32 %v792, %v996
        %v998 = vpop.f32.mrb[0].mxu0
        %v999 = vadd.f32 %v796, %v998
        %v1000 = vpop.f32.mrb[0].mxu0
        %v1001 = vadd.f32 %v792, %v1000
        %v1002 = vpop.f32.mrb[0].mxu0
        %v1003 = vadd.f32 %v796, %v1002
        %1004 = vdwg.mxu0
        %1005 = vmatprep.subr.bf16.mxu0 0
        %1006 = vmatpush1.bf16.msra.mxu0 %v886
        %1007 = vmatprep.subr.bf16.mxu0 0
        %1008 = vmatpush1.bf16.msra.mxu0 %v889
        %1009 = vmatprep.subr.bf16.mxu0 0
        %1010 = vmatpush1.bf16.msra.mxu0 %v892
        %1011 = vmatprep.subr.bf16.mxu0 0
        %1012 = vmatpush1.bf16.msra.mxu0 %v895
        %1013 = vmatprep.subr.bf16.mxu0 0
        %1014 = vmatpush1.bf16.msra.mxu0 %v898
        %1015 = vmatprep.subr.bf16.mxu0 0
        %1016 = vmatpush1.bf16.msra.mxu0 %v901
        %1017 = vmatprep.subr.bf16.mxu0 0
        %1018 = vmatpush1.bf16.msra.mxu0 %v904
        %1019 = vmatprep.subr.bf16.mxu0 0
        %1020 = vmatpush1.bf16.msra.mxu0 %v907
        %1021 = vmatprep.subr.bf16.mxu0 0
        %1022 = vmatpush1.bf16.msra.mxu0 0
        %1023 = vmatprep.subr.bf16.mxu0 0
        %1024 = vmatpush1.bf16.msra.mxu0 0
        %1025 = vmatprep.subr.bf16.mxu0 0
        %1026 = vmatpush1.bf16.msra.mxu0 0
        %1027 = vmatprep.subr.bf16.mxu0 0
        %1028 = vmatpush1.bf16.msra.mxu0 0
        %1029 = vmatprep.subr.bf16.mxu0 0
        %1030 = vmatpush1.bf16.msra.mxu0 0
        %1031 = vmatprep.subr.bf16.mxu0 0
        %1032 = vmatpush1.bf16.msra.mxu0 0
        %1033 = vmatprep.subr.bf16.mxu0 0
        %1034 = vmatpush1.bf16.msra.mxu0 0
        %1035 = vmatprep.subr.bf16.mxu0 0
        %1036 = vmatpush1.bf16.msra.mxu0 0
        %1037 = vmatprep.mubr.bf16.mxu0 0
        %1038 = vmatmul.mubr.bf16.gmra.mrb[0].mxu0 %v746
        %v1039 = vpop.f32.mrb[0].mxu0
        %v1040 = vadd.f32 %v800, %v1039
        %v1041 = vpop.f32.mrb[0].mxu0
        %v1042 = vpop.f32.mrb[0].mxu0
        %v1043 = vadd.f32 %v800, %v1042
        %v1044 = vpop.f32.mrb[0].mxu0
        %1045 = vmatprep.mubr.bf16.mxu0 0
        %1046 = vmatmul.mubr.bf16.gmra.mrb[0].mxu0 %v747
        %v1047 = vpop.f32.mrb[0].mxu0
        %v1048 = vadd.f32 %v800, %v1047
        %v1049 = vpop.f32.mrb[0].mxu0
        %v1050 = vpop.f32.mrb[0].mxu0
        %v1051 = vadd.f32 %v800, %v1050
        %v1052 = vpop.f32.mrb[0].mxu0
        %1053 = vmatprep.mubr.bf16.mxu0 0
        %1054 = vmatmul.mubr.bf16.gmra.mrb[0].mxu0 %v748
        %v1055 = vpop.f32.mrb[0].mxu0
        %v1056 = vadd.f32 %v800, %v1055
        %v1057 = vpop.f32.mrb[0].mxu0
        %v1058 = vpop.f32.mrb[0].mxu0
        %v1059 = vadd.f32 %v800, %v1058
        %v1060 = vpop.f32.mrb[0].mxu0
        %1061 = vmatprep.mubr.bf16.mxu0 0
        %1062 = vmatmul.mubr.bf16.gmra.mrb[0].mxu0 %v749
        %v1063 = vpop.f32.mrb[0].mxu0
        %v1064 = vadd.f32 %v800, %v1063
        %v1065 = vpop.f32.mrb[0].mxu0
        %v1066 = vpop.f32.mrb[0].mxu0
        %v1067 = vadd.f32 %v800, %v1066
        %v1068 = vpop.f32.mrb[0].mxu0
        %1069 = vdwg.mxu0
        %v1070 = vpack.c.bf16 %v971, %v967
        %v1071 = vpack.c.bf16 %v981, %v977
        %v1072 = vpack.c.bf16 %v991, %v987
        %v1073 = vpack.c.bf16 %v1001, %v997
        %v1074 = vpack.c.bf16 %v973, %v969
        %v1075 = vpack.c.bf16 %v983, %v979
        %v1076 = vpack.c.bf16 %v993, %v989
        %v1077 = vpack.c.bf16 %v1003, %v999
        %v1078 = vpack.c.bf16 %v1043, %v1040
        %v1079 = vpack.c.bf16 %v1051, %v1048
        %v1080 = vpack.c.bf16 %v1059, %v1056
        %v1081 = vpack.c.bf16 %v1067, %v1064
        %vm1082 = vcmask 261120
        %v1084 = vsel %vm1082, %v1070, 0
        %v1087 = vsel %vm1082, %v1071, 0
        %v1090 = vsel %vm1082, %v1072, 0
        %v1093 = vsel %vm1082, %v1073, 0
        %v1096 = vsel %vm1082, %v1074, 0
        %v1099 = vsel %vm1082, %v1075, 0
        %v1102 = vsel %vm1082, %v1076, 0
        %v1105 = vsel %vm1082, %v1077, 0
        %1107 = vmatprep.subr.bf16.mxu0 0
        %1108 = vmatpush1.bf16.xpose.msra.mxu0 %v1096
        %1109 = vmatprep.subr.bf16.mxu0 0
        %1110 = vmatpush1.bf16.xpose.msra.mxu0 %v1099
        %1111 = vmatprep.subr.bf16.mxu0 0
        %1112 = vmatpush1.bf16.xpose.msra.mxu0 %v1102
        %1113 = vmatprep.subr.bf16.mxu0 0
        %1114 = vmatpush1.bf16.xpose.msra.mxu0 %v1105
        %1115 = vmatprep.subr.bf16.mxu0 0
        %1116 = vmatpush1.bf16.xpose.msra.mxu0 0
        %1117 = vmatprep.subr.bf16.mxu0 0
        %1118 = vmatpush1.bf16.xpose.msra.mxu0 0
        %1119 = vmatprep.subr.bf16.mxu0 0
        %1120 = vmatpush1.bf16.xpose.msra.mxu0 0
        %1121 = vmatprep.subr.bf16.mxu0 0
        %1122 = vmatpush1.bf16.xpose.msra.mxu0 0
        %1123 = vmatprep.subr.bf16.mxu0 0
        %1124 = vmatpush1.bf16.xpose.msra.mxu0 0
        %1125 = vmatprep.subr.bf16.mxu0 0
        %1126 = vmatpush1.bf16.xpose.msra.mxu0 0
        %1127 = vmatprep.subr.bf16.mxu0 0
        %1128 = vmatpush1.bf16.xpose.msra.mxu0 0
        %1129 = vmatprep.subr.bf16.mxu0 0
        %1130 = vmatpush1.bf16.xpose.msra.mxu0 0
        %1131 = vmatprep.subr.bf16.mxu0 0
        %1132 = vmatpush1.bf16.xpose.msra.mxu0 0
        %1133 = vmatprep.subr.bf16.mxu0 0
        %1134 = vmatpush1.bf16.xpose.msra.mxu0 0
        %1135 = vmatprep.subr.bf16.mxu0 0
        %1136 = vmatpush1.bf16.xpose.msra.mxu0 0
        %1137 = vmatprep.subr.bf16.mxu0 0
        %1138 = vmatpush1.bf16.xpose.msra.mxu0 0
        %1139 = vmatprep.mubr.bf16.mxu0 0
        %1140 = vmatmul.mubr.bf16.gmra.mrb[0].mxu0 %v1084
        %v1141 = vpop.f32.mrb[0].mxu0
        %v1142 = vadd.f32 0.0, %v1141
        %v1143 = vpop.f32.mrb[0].mxu0
        %v1144 = vpop.f32.mrb[0].mxu0
        %v1145 = vadd.f32 0.0, %v1144
        %v1146 = vpop.f32.mrb[0].mxu0
        %1147 = vmatprep.mubr.bf16.mxu0 0
        %1148 = vmatmul.mubr.bf16.gmra.mrb[0].mxu0 %v1087
        %v1149 = vpop.f32.mrb[0].mxu0
        %v1150 = vadd.f32 0.0, %v1149
        %v1151 = vpop.f32.mrb[0].mxu0
        %v1152 = vpop.f32.mrb[0].mxu0
        %v1153 = vadd.f32 0.0, %v1152
        %v1154 = vpop.f32.mrb[0].mxu0
        %1155 = vmatprep.mubr.bf16.mxu0 0
        %1156 = vmatmul.mubr.bf16.gmra.mrb[0].mxu0 %v1090
        %v1157 = vpop.f32.mrb[0].mxu0
        %v1158 = vadd.f32 0.0, %v1157
        %v1159 = vpop.f32.mrb[0].mxu0
        %v1160 = vpop.f32.mrb[0].mxu0
        %v1161 = vadd.f32 0.0, %v1160
        %v1162 = vpop.f32.mrb[0].mxu0
        %1163 = vmatprep.mubr.bf16.mxu0 0
        %1164 = vmatmul.mubr.bf16.gmra.mrb[0].mxu0 %v1093
        %v1165 = vpop.f32.mrb[0].mxu0
        %v1166 = vadd.f32 0.0, %v1165
        %v1167 = vpop.f32.mrb[0].mxu0
        %v1168 = vpop.f32.mrb[0].mxu0
        %v1169 = vadd.f32 0.0, %v1168
        %v1170 = vpop.f32.mrb[0].mxu0
        %1171 = vdwg.mxu0
        %vm1172 = vcmask 523264
        %v1173 = vsel %vm1172, %v1142, -inf
        %1174 = vmax.xlane.f32.xlu0 %v1173
        %v1175 = vpop.xlane.xlu0 %1174
        %v1176 = vsel %vm1172, %v1145, -inf
        %1177 = vmax.xlane.f32.xlu0 %v1176
        %v1178 = vpop.xlane.xlu0 %1177
        %v1179 = vsel %vm1172, %v1150, -inf
        %1180 = vmax.xlane.f32.xlu0 %v1179
        %v1181 = vpop.xlane.xlu0 %1180
        %v1182 = vsel %vm1172, %v1153, -inf
        %1183 = vmax.xlane.f32.xlu0 %v1182
        %v1184 = vpop.xlane.xlu0 %1183
        %v1185 = vsel %vm1172, %v1158, -inf
        %1186 = vmax.xlane.f32.xlu0 %v1185
        %v1187 = vpop.xlane.xlu0 %1186
        %v1188 = vsel %vm1172, %v1161, -inf
        %1189 = vmax.xlane.f32.xlu0 %v1188
        %v1190 = vpop.xlane.xlu0 %1189
        %v1191 = vsel %vm1172, %v1166, -inf
        %1192 = vmax.xlane.f32.xlu0 %v1191
        %v1193 = vpop.xlane.xlu0 %1192
        %v1194 = vsel %vm1172, %v1169, -inf
        %1195 = vmax.xlane.f32.xlu0 %v1194
        %v1196 = vpop.xlane.xlu0 %1195
        %v1197 = vsub.f32 %v1142, %v1175
        %v1198 = vsub.f32 %v1145, %v1178
        %v1199 = vsub.f32 %v1150, %v1181
        %v1200 = vsub.f32 %v1153, %v1184
        %v1201 = vsub.f32 %v1158, %v1187
        %v1202 = vsub.f32 %v1161, %v1190
        %v1203 = vsub.f32 %v1166, %v1193
        %v1204 = vsub.f32 %v1169, %v1196
        %v1205 = vmul.f32 %v1197, 1.442695
        %v1206 = vpow.pop %v1205
        %v1207 = vmul.f32 %v1198, 1.442695
        %v1208 = vpow.pop %v1207
        %v1209 = vmul.f32 %v1199, 1.442695
        %v1210 = vpow.pop %v1209
        %v1211 = vmul.f32 %v1200, 1.442695
        %v1212 = vpow.pop %v1211
        %v1213 = vmul.f32 %v1201, 1.442695
        %v1214 = vpow.pop %v1213
        %v1215 = vmul.f32 %v1202, 1.442695
        %v1216 = vpow.pop %v1215
        %v1217 = vmul.f32 %v1203, 1.442695
        %v1218 = vpow.pop %v1217
        %v1219 = vmul.f32 %v1204, 1.442695
        %v1220 = vpow.pop %v1219
        %v1221 = vsel %vm1172, %v1206, 0.0
        %1222 = vadd.xlane.f32.xlu0 %v1221
        %v1223 = vpop.xlane.xlu0 %1222
        %v1224 = vsel %vm1172, %v1208, 0.0
        %1225 = vadd.xlane.f32.xlu0 %v1224
        %v1226 = vpop.xlane.xlu0 %1225
        %v1227 = vsel %vm1172, %v1210, 0.0
        %1228 = vadd.xlane.f32.xlu0 %v1227
        %v1229 = vpop.xlane.xlu0 %1228
        %v1230 = vsel %vm1172, %v1212, 0.0
        %1231 = vadd.xlane.f32.xlu0 %v1230
        %v1232 = vpop.xlane.xlu0 %1231
        %v1233 = vsel %vm1172, %v1214, 0.0
        %1234 = vadd.xlane.f32.xlu0 %v1233
        %v1235 = vpop.xlane.xlu0 %1234
        %v1236 = vsel %vm1172, %v1216, 0.0
        %1237 = vadd.xlane.f32.xlu0 %v1236
        %v1238 = vpop.xlane.xlu0 %1237
        %v1239 = vsel %vm1172, %v1218, 0.0
        %1240 = vadd.xlane.f32.xlu0 %v1239
        %v1241 = vpop.xlane.xlu0 %1240
        %v1242 = vsel %vm1172, %v1220, 0.0
        %1243 = vadd.xlane.f32.xlu0 %v1242
        %v1244 = vpop.xlane.xlu0 %1243
        %v1245 = vrcp.pop %v1223
        %v1246 = vrcp.pop %v1226
        %v1247 = vrcp.pop %v1229
        %v1248 = vrcp.pop %v1232
        %v1249 = vrcp.pop %v1235
        %v1250 = vrcp.pop %v1238
        %v1251 = vrcp.pop %v1241
        %v1252 = vrcp.pop %v1244
        %v1253 = vmul.f32 %v1206, %v1245
        %v1254 = vmul.f32 %v1208, %v1246
        %v1255 = vmul.f32 %v1210, %v1247
        %v1256 = vmul.f32 %v1212, %v1248
        %v1257 = vmul.f32 %v1214, %v1249
        %v1258 = vmul.f32 %v1216, %v1250
        %v1259 = vmul.f32 %v1218, %v1251
        %v1260 = vmul.f32 %v1220, %v1252
        %v1261 = vpack.c.bf16 %v1254, %v1253
        %v1262 = vpack.c.bf16 %v1256, %v1255
        %v1263 = vpack.c.bf16 %v1258, %v1257
        %v1264 = vpack.c.bf16 %v1260, %v1259
        %v1266 = vsel %vm1172, %v1261, 0
        %v1269 = vsel %vm1172, %v1262, 0
        %v1272 = vsel %vm1172, %v1263, 0
        %v1275 = vsel %vm1172, %v1264, 0
        %1277 = vmatprep.subr.bf16.mxu0 0
        %1278 = vmatpush1.bf16.msra.mxu0 %v1078
        %1279 = vmatprep.subr.bf16.mxu0 0
        %1280 = vmatpush1.bf16.msra.mxu0 %v1079
        %1281 = vmatprep.subr.bf16.mxu0 0
        %1282 = vmatpush1.bf16.msra.mxu0 %v1080
        %1283 = vmatprep.subr.bf16.mxu0 0
        %1284 = vmatpush1.bf16.msra.mxu0 %v1081
        %1285 = vmatprep.subr.bf16.mxu0 0
        %1286 = vmatpush1.bf16.msra.mxu0 0
        %1287 = vmatprep.subr.bf16.mxu0 0
        %1288 = vmatpush1.bf16.msra.mxu0 0
        %1289 = vmatprep.subr.bf16.mxu0 0
        %1290 = vmatpush1.bf16.msra.mxu0 0
        %1291 = vmatprep.subr.bf16.mxu0 0
        %1292 = vmatpush1.bf16.msra.mxu0 0
        %1293 = vmatprep.subr.bf16.mxu0 0
        %1294 = vmatpush1.bf16.msra.mxu0 0
        %1295 = vmatprep.subr.bf16.mxu0 0
        %1296 = vmatpush1.bf16.msra.mxu0 0
        %1297 = vmatprep.subr.bf16.mxu0 0
        %1298 = vmatpush1.bf16.msra.mxu0 0
        %1299 = vmatprep.subr.bf16.mxu0 0
        %1300 = vmatpush1.bf16.msra.mxu0 0
        %1301 = vmatprep.subr.bf16.mxu0 0
        %1302 = vmatpush1.bf16.msra.mxu0 0
        %1303 = vmatprep.subr.bf16.mxu0 0
        %1304 = vmatpush1.bf16.msra.mxu0 0
        %1305 = vmatprep.subr.bf16.mxu0 0
        %1306 = vmatpush1.bf16.msra.mxu0 0
        %1307 = vmatprep.subr.bf16.mxu0 0
        %1308 = vmatpush1.bf16.msra.mxu0 0
        %1309 = vmatprep.mubr.bf16.mxu0 0
        %1310 = vmatmul.mubr.bf16.gmra.mrb[0].mxu0 %v1266
        %v1311 = vpop.f32.mrb[0].mxu0
        %v1312 = vadd.f32 0.0, %v1311
        %v1313 = vpop.f32.mrb[0].mxu0
        %v1314 = vpop.f32.mrb[0].mxu0
        %v1315 = vadd.f32 0.0, %v1314
        %v1316 = vpop.f32.mrb[0].mxu0
        %1317 = vmatprep.mubr.bf16.mxu0 0
        %1318 = vmatmul.mubr.bf16.gmra.mrb[0].mxu0 %v1269
        %v1319 = vpop.f32.mrb[0].mxu0
        %v1320 = vadd.f32 0.0, %v1319
        %v1321 = vpop.f32.mrb[0].mxu0
        %v1322 = vpop.f32.mrb[0].mxu0
        %v1323 = vadd.f32 0.0, %v1322
        %v1324 = vpop.f32.mrb[0].mxu0
        %1325 = vmatprep.mubr.bf16.mxu0 0
        %1326 = vmatmul.mubr.bf16.gmra.mrb[0].mxu0 %v1272
        %v1327 = vpop.f32.mrb[0].mxu0
        %v1328 = vadd.f32 0.0, %v1327
        %v1329 = vpop.f32.mrb[0].mxu0
        %v1330 = vpop.f32.mrb[0].mxu0
        %v1331 = vadd.f32 0.0, %v1330
        %v1332 = vpop.f32.mrb[0].mxu0
        %1333 = vmatprep.mubr.bf16.mxu0 0
        %1334 = vmatmul.mubr.bf16.gmra.mrb[0].mxu0 %v1275
        %v1335 = vpop.f32.mrb[0].mxu0
        %v1336 = vadd.f32 0.0, %v1335
        %v1337 = vpop.f32.mrb[0].mxu0
        %v1338 = vpop.f32.mrb[0].mxu0
        %v1339 = vadd.f32 0.0, %v1338
        %v1340 = vpop.f32.mrb[0].mxu0
        %1341 = vdwg.mxu0
        %1346 = vrot.lane.b32.xlu0 %v1070, 96
        %v1347 = vpop.permute.xlu0 %1346
        %1348 = vrot.lane.b32.xlu0 %v1071, 96
        %v1349 = vpop.permute.xlu0 %1348
        %1350 = vrot.lane.b32.xlu0 %v1072, 96
        %v1351 = vpop.permute.xlu0 %1350
        %1352 = vrot.lane.b32.xlu0 %v1073, 96
        %v1353 = vpop.permute.xlu0 %1352
        %1358 = vrot.lane.b32.xlu0 %v1074, 96
        %v1359 = vpop.permute.xlu0 %1358
        %1360 = vrot.lane.b32.xlu0 %v1075, 96
        %v1361 = vpop.permute.xlu0 %1360
        %1362 = vrot.lane.b32.xlu0 %v1076, 96
        %v1363 = vpop.permute.xlu0 %1362
        %1364 = vrot.lane.b32.xlu0 %v1077, 96
        %v1365 = vpop.permute.xlu0 %1364
        %v1367 = vsel %vm1082, %v1347, 0
        %v1370 = vsel %vm1082, %v1349, 0
        %v1373 = vsel %vm1082, %v1351, 0
        %v1376 = vsel %vm1082, %v1353, 0
        %v1379 = vsel %vm1082, %v1359, 0
        %v1382 = vsel %vm1082, %v1361, 0
        %v1385 = vsel %vm1082, %v1363, 0
        %v1388 = vsel %vm1082, %v1365, 0
        %1390 = vmatprep.subr.bf16.mxu0 0
        %1391 = vmatpush1.bf16.xpose.msra.mxu0 %v1379
        %1392 = vmatprep.subr.bf16.mxu0 0
        %1393 = vmatpush1.bf16.xpose.msra.mxu0 %v1382
        %1394 = vmatprep.subr.bf16.mxu0 0
        %1395 = vmatpush1.bf16.xpose.msra.mxu0 %v1385
        %1396 = vmatprep.subr.bf16.mxu0 0
        %1397 = vmatpush1.bf16.xpose.msra.mxu0 %v1388
        %1398 = vmatprep.subr.bf16.mxu0 0
        %1399 = vmatpush1.bf16.xpose.msra.mxu0 0
        %1400 = vmatprep.subr.bf16.mxu0 0
        %1401 = vmatpush1.bf16.xpose.msra.mxu0 0
        %1402 = vmatprep.subr.bf16.mxu0 0
        %1403 = vmatpush1.bf16.xpose.msra.mxu0 0
        %1404 = vmatprep.subr.bf16.mxu0 0
        %1405 = vmatpush1.bf16.xpose.msra.mxu0 0
        %1406 = vmatprep.subr.bf16.mxu0 0
        %1407 = vmatpush1.bf16.xpose.msra.mxu0 0
        %1408 = vmatprep.subr.bf16.mxu0 0
        %1409 = vmatpush1.bf16.xpose.msra.mxu0 0
        %1410 = vmatprep.subr.bf16.mxu0 0
        %1411 = vmatpush1.bf16.xpose.msra.mxu0 0
        %1412 = vmatprep.subr.bf16.mxu0 0
        %1413 = vmatpush1.bf16.xpose.msra.mxu0 0
        %1414 = vmatprep.subr.bf16.mxu0 0
        %1415 = vmatpush1.bf16.xpose.msra.mxu0 0
        %1416 = vmatprep.subr.bf16.mxu0 0
        %1417 = vmatpush1.bf16.xpose.msra.mxu0 0
        %1418 = vmatprep.subr.bf16.mxu0 0
        %1419 = vmatpush1.bf16.xpose.msra.mxu0 0
        %1420 = vmatprep.subr.bf16.mxu0 0
        %1421 = vmatpush1.bf16.xpose.msra.mxu0 0
        %1422 = vmatprep.mubr.bf16.mxu0 0
        %1423 = vmatmul.mubr.bf16.gmra.mrb[0].mxu0 %v1367
        %v1424 = vpop.f32.mrb[0].mxu0
        %v1425 = vadd.f32 0.0, %v1424
        %v1426 = vpop.f32.mrb[0].mxu0
        %v1427 = vpop.f32.mrb[0].mxu0
        %v1428 = vadd.f32 0.0, %v1427
        %v1429 = vpop.f32.mrb[0].mxu0
        %1430 = vmatprep.mubr.bf16.mxu0 0
        %1431 = vmatmul.mubr.bf16.gmra.mrb[0].mxu0 %v1370
        %v1432 = vpop.f32.mrb[0].mxu0
        %v1433 = vadd.f32 0.0, %v1432
        %v1434 = vpop.f32.mrb[0].mxu0
        %v1435 = vpop.f32.mrb[0].mxu0
        %v1436 = vadd.f32 0.0, %v1435
        %v1437 = vpop.f32.mrb[0].mxu0
        %1438 = vmatprep.mubr.bf16.mxu0 0
        %1439 = vmatmul.mubr.bf16.gmra.mrb[0].mxu0 %v1373
        %v1440 = vpop.f32.mrb[0].mxu0
        %v1441 = vadd.f32 0.0, %v1440
        %v1442 = vpop.f32.mrb[0].mxu0
        %v1443 = vpop.f32.mrb[0].mxu0
        %v1444 = vadd.f32 0.0, %v1443
        %v1445 = vpop.f32.mrb[0].mxu0
        %1446 = vmatprep.mubr.bf16.mxu0 0
        %1447 = vmatmul.mubr.bf16.gmra.mrb[0].mxu0 %v1376
        %v1448 = vpop.f32.mrb[0].mxu0
        %v1449 = vadd.f32 0.0, %v1448
        %v1450 = vpop.f32.mrb[0].mxu0
        %v1451 = vpop.f32.mrb[0].mxu0
        %v1452 = vadd.f32 0.0, %v1451
        %v1453 = vpop.f32.mrb[0].mxu0
        %1454 = vdwg.mxu0
        %v1455 = vsel %vm1172, %v1425, -inf
        %1456 = vmax.xlane.f32.xlu0 %v1455
        %v1457 = vpop.xlane.xlu0 %1456
        %v1458 = vsel %vm1172, %v1428, -inf
        %1459 = vmax.xlane.f32.xlu0 %v1458
        %v1460 = vpop.xlane.xlu0 %1459
        %v1461 = vsel %vm1172, %v1433, -inf
        %1462 = vmax.xlane.f32.xlu0 %v1461
        %v1463 = vpop.xlane.xlu0 %1462
        %v1464 = vsel %vm1172, %v1436, -inf
        %1465 = vmax.xlane.f32.xlu0 %v1464
        %v1466 = vpop.xlane.xlu0 %1465
        %v1467 = vsel %vm1172, %v1441, -inf
        %1468 = vmax.xlane.f32.xlu0 %v1467
        %v1469 = vpop.xlane.xlu0 %1468
        %v1470 = vsel %vm1172, %v1444, -inf
        %1471 = vmax.xlane.f32.xlu0 %v1470
        %v1472 = vpop.xlane.xlu0 %1471
        %v1473 = vsel %vm1172, %v1449, -inf
        %1474 = vmax.xlane.f32.xlu0 %v1473
        %v1475 = vpop.xlane.xlu0 %1474
        %v1476 = vsel %vm1172, %v1452, -inf
        %1477 = vmax.xlane.f32.xlu0 %v1476
        %v1478 = vpop.xlane.xlu0 %1477
        %v1479 = vsub.f32 %v1425, %v1457
        %v1480 = vsub.f32 %v1428, %v1460
        %v1481 = vsub.f32 %v1433, %v1463
        %v1482 = vsub.f32 %v1436, %v1466
        %v1483 = vsub.f32 %v1441, %v1469
        %v1484 = vsub.f32 %v1444, %v1472
        %v1485 = vsub.f32 %v1449, %v1475
        %v1486 = vsub.f32 %v1452, %v1478
        %v1487 = vmul.f32 %v1479, 1.442695
        %v1488 = vpow.pop %v1487
        %v1489 = vmul.f32 %v1480, 1.442695
        %v1490 = vpow.pop %v1489
        %v1491 = vmul.f32 %v1481, 1.442695
        %v1492 = vpow.pop %v1491
        %v1493 = vmul.f32 %v1482, 1.442695
        %v1494 = vpow.pop %v1493
        %v1495 = vmul.f32 %v1483, 1.442695
        %v1496 = vpow.pop %v1495
        %v1497 = vmul.f32 %v1484, 1.442695
        %v1498 = vpow.pop %v1497
        %v1499 = vmul.f32 %v1485, 1.442695
        %v1500 = vpow.pop %v1499
        %v1501 = vmul.f32 %v1486, 1.442695
        %v1502 = vpow.pop %v1501
        %v1503 = vsel %vm1172, %v1488, 0.0
        %1504 = vadd.xlane.f32.xlu0 %v1503
        %v1505 = vpop.xlane.xlu0 %1504
        %v1506 = vsel %vm1172, %v1490, 0.0
        %1507 = vadd.xlane.f32.xlu0 %v1506
        %v1508 = vpop.xlane.xlu0 %1507
        %v1509 = vsel %vm1172, %v1492, 0.0
        %1510 = vadd.xlane.f32.xlu0 %v1509
        %v1511 = vpop.xlane.xlu0 %1510
        %v1512 = vsel %vm1172, %v1494, 0.0
        %1513 = vadd.xlane.f32.xlu0 %v1512
        %v1514 = vpop.xlane.xlu0 %1513
        %v1515 = vsel %vm1172, %v1496, 0.0
        %1516 = vadd.xlane.f32.xlu0 %v1515
        %v1517 = vpop.xlane.xlu0 %1516
        %v1518 = vsel %vm1172, %v1498, 0.0
        %1519 = vadd.xlane.f32.xlu0 %v1518
        %v1520 = vpop.xlane.xlu0 %1519
        %v1521 = vsel %vm1172, %v1500, 0.0
        %1522 = vadd.xlane.f32.xlu0 %v1521
        %v1523 = vpop.xlane.xlu0 %1522
        %v1524 = vsel %vm1172, %v1502, 0.0
        %1525 = vadd.xlane.f32.xlu0 %v1524
        %v1526 = vpop.xlane.xlu0 %1525
        %v1527 = vrcp.pop %v1505
        %v1528 = vrcp.pop %v1508
        %v1529 = vrcp.pop %v1511
        %v1530 = vrcp.pop %v1514
        %v1531 = vrcp.pop %v1517
        %v1532 = vrcp.pop %v1520
        %v1533 = vrcp.pop %v1523
        %v1534 = vrcp.pop %v1526
        %v1535 = vmul.f32 %v1488, %v1527
        %v1536 = vmul.f32 %v1490, %v1528
        %v1537 = vmul.f32 %v1492, %v1529
        %v1538 = vmul.f32 %v1494, %v1530
        %v1539 = vmul.f32 %v1496, %v1531
        %v1540 = vmul.f32 %v1498, %v1532
        %v1541 = vmul.f32 %v1500, %v1533
        %v1542 = vmul.f32 %v1502, %v1534
        %v1543 = vpack.c.bf16 %v1536, %v1535
        %v1544 = vpack.c.bf16 %v1538, %v1537
        %v1545 = vpack.c.bf16 %v1540, %v1539
        %v1546 = vpack.c.bf16 %v1542, %v1541
        %1551 = vrot.lane.b32.xlu0 %v1078, 96
        %v1552 = vpop.permute.xlu0 %1551
        %1553 = vrot.lane.b32.xlu0 %v1079, 96
        %v1554 = vpop.permute.xlu0 %1553
        %1555 = vrot.lane.b32.xlu0 %v1080, 96
        %v1556 = vpop.permute.xlu0 %1555
        %1557 = vrot.lane.b32.xlu0 %v1081, 96
        %v1558 = vpop.permute.xlu0 %1557
        %v1564 = vsel %vm1172, %v1543, 0
        %v1567 = vsel %vm1172, %v1544, 0
        %v1570 = vsel %vm1172, %v1545, 0
        %v1573 = vsel %vm1172, %v1546, 0
        %1575 = vmatprep.subr.bf16.mxu0 0
        %1576 = vmatpush1.bf16.msra.mxu0 %v1552
        %1577 = vmatprep.subr.bf16.mxu0 0
        %1578 = vmatpush1.bf16.msra.mxu0 %v1554
        %1579 = vmatprep.subr.bf16.mxu0 0
        %1580 = vmatpush1.bf16.msra.mxu0 %v1556
        %1581 = vmatprep.subr.bf16.mxu0 0
        %1582 = vmatpush1.bf16.msra.mxu0 %v1558
        %1583 = vmatprep.subr.bf16.mxu0 0
        %1584 = vmatpush1.bf16.msra.mxu0 0
        %1585 = vmatprep.subr.bf16.mxu0 0
        %1586 = vmatpush1.bf16.msra.mxu0 0
        %1587 = vmatprep.subr.bf16.mxu0 0
        %1588 = vmatpush1.bf16.msra.mxu0 0
        %1589 = vmatprep.subr.bf16.mxu0 0
        %1590 = vmatpush1.bf16.msra.mxu0 0
        %1591 = vmatprep.subr.bf16.mxu0 0
        %1592 = vmatpush1.bf16.msra.mxu0 0
        %1593 = vmatprep.subr.bf16.mxu0 0
        %1594 = vmatpush1.bf16.msra.mxu0 0
        %1595 = vmatprep.subr.bf16.mxu0 0
        %1596 = vmatpush1.bf16.msra.mxu0 0
        %1597 = vmatprep.subr.bf16.mxu0 0
        %1598 = vmatpush1.bf16.msra.mxu0 0
        %1599 = vmatprep.subr.bf16.mxu0 0
        %1600 = vmatpush1.bf16.msra.mxu0 0
        %1601 = vmatprep.subr.bf16.mxu0 0
        %1602 = vmatpush1.bf16.msra.mxu0 0
        %1603 = vmatprep.subr.bf16.mxu0 0
        %1604 = vmatpush1.bf16.msra.mxu0 0
        %1605 = vmatprep.subr.bf16.mxu0 0
        %1606 = vmatpush1.bf16.msra.mxu0 0
        %1607 = vmatprep.mubr.bf16.mxu0 0
        %1608 = vmatmul.mubr.bf16.gmra.mrb[0].mxu0 %v1564
        %v1609 = vpop.f32.mrb[0].mxu0
        %v1610 = vadd.f32 0.0, %v1609
        %v1611 = vpop.f32.mrb[0].mxu0
        %v1612 = vpop.f32.mrb[0].mxu0
        %v1613 = vadd.f32 0.0, %v1612
        %v1614 = vpop.f32.mrb[0].mxu0
        %1615 = vmatprep.mubr.bf16.mxu0 0
        %1616 = vmatmul.mubr.bf16.gmra.mrb[0].mxu0 %v1567
        %v1617 = vpop.f32.mrb[0].mxu0
        %v1618 = vadd.f32 0.0, %v1617
        %v1619 = vpop.f32.mrb[0].mxu0
        %v1620 = vpop.f32.mrb[0].mxu0
        %v1621 = vadd.f32 0.0, %v1620
        %v1622 = vpop.f32.mrb[0].mxu0
        %1623 = vmatprep.mubr.bf16.mxu0 0
        %1624 = vmatmul.mubr.bf16.gmra.mrb[0].mxu0 %v1570
        %v1625 = vpop.f32.mrb[0].mxu0
        %v1626 = vadd.f32 0.0, %v1625
        %v1627 = vpop.f32.mrb[0].mxu0
        %v1628 = vpop.f32.mrb[0].mxu0
        %v1629 = vadd.f32 0.0, %v1628
        %v1630 = vpop.f32.mrb[0].mxu0
        %1631 = vmatprep.mubr.bf16.mxu0 0
        %1632 = vmatmul.mubr.bf16.gmra.mrb[0].mxu0 %v1573
        %v1633 = vpop.f32.mrb[0].mxu0
        %v1634 = vadd.f32 0.0, %v1633
        %v1635 = vpop.f32.mrb[0].mxu0
        %v1636 = vpop.f32.mrb[0].mxu0
        %v1637 = vadd.f32 0.0, %v1636
        %v1638 = vpop.f32.mrb[0].mxu0
        %1639 = vdwg.mxu0
        %1640 = vrot.lane.b32.xlu0 %v1070, 64
        %v1641 = vpop.permute.xlu0 %1640
        %1642 = vrot.lane.b32.xlu0 %v1071, 64
        %v1643 = vpop.permute.xlu0 %1642
        %1644 = vrot.lane.b32.xlu0 %v1072, 64
        %v1645 = vpop.permute.xlu0 %1644
        %1646 = vrot.lane.b32.xlu0 %v1073, 64
        %v1647 = vpop.permute.xlu0 %1646
        %1648 = vrot.lane.b32.xlu0 %v1074, 64
        %v1649 = vpop.permute.xlu0 %1648
        %1650 = vrot.lane.b32.xlu0 %v1075, 64
        %v1651 = vpop.permute.xlu0 %1650
        %1652 = vrot.lane.b32.xlu0 %v1076, 64
        %v1653 = vpop.permute.xlu0 %1652
        %1654 = vrot.lane.b32.xlu0 %v1077, 64
        %v1655 = vpop.permute.xlu0 %1654
        %v1657 = vsel %vm1082, %v1641, 0
        %v1660 = vsel %vm1082, %v1643, 0
        %v1663 = vsel %vm1082, %v1645, 0
        %v1666 = vsel %vm1082, %v1647, 0
        %v1669 = vsel %vm1082, %v1649, 0
        %v1672 = vsel %vm1082, %v1651, 0
        %v1675 = vsel %vm1082, %v1653, 0
        %v1678 = vsel %vm1082, %v1655, 0
        %1680 = vmatprep.subr.bf16.mxu0 0
        %1681 = vmatpush1.bf16.xpose.msra.mxu0 %v1669
        %1682 = vmatprep.subr.bf16.mxu0 0
        %1683 = vmatpush1.bf16.xpose.msra.mxu0 %v1672
        %1684 = vmatprep.subr.bf16.mxu0 0
        %1685 = vmatpush1.bf16.xpose.msra.mxu0 %v1675
        %1686 = vmatprep.subr.bf16.mxu0 0
        %1687 = vmatpush1.bf16.xpose.msra.mxu0 %v1678
        %1688 = vmatprep.subr.bf16.mxu0 0
        %1689 = vmatpush1.bf16.xpose.msra.mxu0 0
        %1690 = vmatprep.subr.bf16.mxu0 0
        %1691 = vmatpush1.bf16.xpose.msra.mxu0 0
        %1692 = vmatprep.subr.bf16.mxu0 0
        %1693 = vmatpush1.bf16.xpose.msra.mxu0 0
        %1694 = vmatprep.subr.bf16.mxu0 0
        %1695 = vmatpush1.bf16.xpose.msra.mxu0 0
        %1696 = vmatprep.subr.bf16.mxu0 0
        %1697 = vmatpush1.bf16.xpose.msra.mxu0 0
        %1698 = vmatprep.subr.bf16.mxu0 0
        %1699 = vmatpush1.bf16.xpose.msra.mxu0 0
        %1700 = vmatprep.subr.bf16.mxu0 0
        %1701 = vmatpush1.bf16.xpose.msra.mxu0 0
        %1702 = vmatprep.subr.bf16.mxu0 0
        %1703 = vmatpush1.bf16.xpose.msra.mxu0 0
        %1704 = vmatprep.subr.bf16.mxu0 0
        %1705 = vmatpush1.bf16.xpose.msra.mxu0 0
        %1706 = vmatprep.subr.bf16.mxu0 0
        %1707 = vmatpush1.bf16.xpose.msra.mxu0 0
        %1708 = vmatprep.subr.bf16.mxu0 0
        %1709 = vmatpush1.bf16.xpose.msra.mxu0 0
        %1710 = vmatprep.subr.bf16.mxu0 0
        %1711 = vmatpush1.bf16.xpose.msra.mxu0 0
        %1712 = vmatprep.mubr.bf16.mxu0 0
        %1713 = vmatmul.mubr.bf16.gmra.mrb[0].mxu0 %v1657
        %v1714 = vpop.f32.mrb[0].mxu0
        %v1715 = vadd.f32 0.0, %v1714
        %v1716 = vpop.f32.mrb[0].mxu0
        %v1717 = vpop.f32.mrb[0].mxu0
        %v1718 = vadd.f32 0.0, %v1717
        %v1719 = vpop.f32.mrb[0].mxu0
        %1720 = vmatprep.mubr.bf16.mxu0 0
        %1721 = vmatmul.mubr.bf16.gmra.mrb[0].mxu0 %v1660
        %v1722 = vpop.f32.mrb[0].mxu0
        %v1723 = vadd.f32 0.0, %v1722
        %v1724 = vpop.f32.mrb[0].mxu0
        %v1725 = vpop.f32.mrb[0].mxu0
        %v1726 = vadd.f32 0.0, %v1725
        %v1727 = vpop.f32.mrb[0].mxu0
        %1728 = vmatprep.mubr.bf16.mxu0 0
        %1729 = vmatmul.mubr.bf16.gmra.mrb[0].mxu0 %v1663
        %v1730 = vpop.f32.mrb[0].mxu0
        %v1731 = vadd.f32 0.0, %v1730
        %v1732 = vpop.f32.mrb[0].mxu0
        %v1733 = vpop.f32.mrb[0].mxu0
        %v1734 = vadd.f32 0.0, %v1733
        %v1735 = vpop.f32.mrb[0].mxu0
        %1736 = vmatprep.mubr.bf16.mxu0 0
        %1737 = vmatmul.mubr.bf16.gmra.mrb[0].mxu0 %v1666
        %v1738 = vpop.f32.mrb[0].mxu0
        %v1739 = vadd.f32 0.0, %v1738
        %v1740 = vpop.f32.mrb[0].mxu0
        %v1741 = vpop.f32.mrb[0].mxu0
        %v1742 = vadd.f32 0.0, %v1741
        %v1743 = vpop.f32.mrb[0].mxu0
        %1744 = vdwg.mxu0
        %v1745 = vsel %vm1172, %v1715, -inf
        %1746 = vmax.xlane.f32.xlu0 %v1745
        %v1747 = vpop.xlane.xlu0 %1746
        %v1748 = vsel %vm1172, %v1718, -inf
        %1749 = vmax.xlane.f32.xlu0 %v1748
        %v1750 = vpop.xlane.xlu0 %1749
        %v1751 = vsel %vm1172, %v1723, -inf
        %1752 = vmax.xlane.f32.xlu0 %v1751
        %v1753 = vpop.xlane.xlu0 %1752
        %v1754 = vsel %vm1172, %v1726, -inf
        %1755 = vmax.xlane.f32.xlu0 %v1754
        %v1756 = vpop.xlane.xlu0 %1755
        %v1757 = vsel %vm1172, %v1731, -inf
        %1758 = vmax.xlane.f32.xlu0 %v1757
        %v1759 = vpop.xlane.xlu0 %1758
        %v1760 = vsel %vm1172, %v1734, -inf
        %1761 = vmax.xlane.f32.xlu0 %v1760
        %v1762 = vpop.xlane.xlu0 %1761
        %v1763 = vsel %vm1172, %v1739, -inf
        %1764 = vmax.xlane.f32.xlu0 %v1763
        %v1765 = vpop.xlane.xlu0 %1764
        %v1766 = vsel %vm1172, %v1742, -inf
        %1767 = vmax.xlane.f32.xlu0 %v1766
        %v1768 = vpop.xlane.xlu0 %1767
        %v1769 = vsub.f32 %v1715, %v1747
        %v1770 = vsub.f32 %v1718, %v1750
        %v1771 = vsub.f32 %v1723, %v1753
        %v1772 = vsub.f32 %v1726, %v1756
        %v1773 = vsub.f32 %v1731, %v1759
        %v1774 = vsub.f32 %v1734, %v1762
        %v1775 = vsub.f32 %v1739, %v1765
        %v1776 = vsub.f32 %v1742, %v1768
        %v1777 = vmul.f32 %v1769, 1.442695
        %v1778 = vpow.pop %v1777
        %v1779 = vmul.f32 %v1770, 1.442695
        %v1780 = vpow.pop %v1779
        %v1781 = vmul.f32 %v1771, 1.442695
        %v1782 = vpow.pop %v1781
        %v1783 = vmul.f32 %v1772, 1.442695
        %v1784 = vpow.pop %v1783
        %v1785 = vmul.f32 %v1773, 1.442695
        %v1786 = vpow.pop %v1785
        %v1787 = vmul.f32 %v1774, 1.442695
        %v1788 = vpow.pop %v1787
        %v1789 = vmul.f32 %v1775, 1.442695
        %v1790 = vpow.pop %v1789
        %v1791 = vmul.f32 %v1776, 1.442695
        %v1792 = vpow.pop %v1791
        %v1793 = vsel %vm1172, %v1778, 0.0
        %1794 = vadd.xlane.f32.xlu0 %v1793
        %v1795 = vpop.xlane.xlu0 %1794
        %v1796 = vsel %vm1172, %v1780, 0.0
        %1797 = vadd.xlane.f32.xlu0 %v1796
        %v1798 = vpop.xlane.xlu0 %1797
        %v1799 = vsel %vm1172, %v1782, 0.0
        %1800 = vadd.xlane.f32.xlu0 %v1799
        %v1801 = vpop.xlane.xlu0 %1800
        %v1802 = vsel %vm1172, %v1784, 0.0
        %1803 = vadd.xlane.f32.xlu0 %v1802
        %v1804 = vpop.xlane.xlu0 %1803
        %v1805 = vsel %vm1172, %v1786, 0.0
        %1806 = vadd.xlane.f32.xlu0 %v1805
        %v1807 = vpop.xlane.xlu0 %1806
        %v1808 = vsel %vm1172, %v1788, 0.0
        %1809 = vadd.xlane.f32.xlu0 %v1808
        %v1810 = vpop.xlane.xlu0 %1809
        %v1811 = vsel %vm1172, %v1790, 0.0
        %1812 = vadd.xlane.f32.xlu0 %v1811
        %v1813 = vpop.xlane.xlu0 %1812
        %v1814 = vsel %vm1172, %v1792, 0.0
        %1815 = vadd.xlane.f32.xlu0 %v1814
        %v1816 = vpop.xlane.xlu0 %1815
        %v1817 = vrcp.pop %v1795
        %v1818 = vrcp.pop %v1798
        %v1819 = vrcp.pop %v1801
        %v1820 = vrcp.pop %v1804
        %v1821 = vrcp.pop %v1807
        %v1822 = vrcp.pop %v1810
        %v1823 = vrcp.pop %v1813
        %v1824 = vrcp.pop %v1816
        %v1825 = vmul.f32 %v1778, %v1817
        %v1826 = vmul.f32 %v1780, %v1818
        %v1827 = vmul.f32 %v1782, %v1819
        %v1828 = vmul.f32 %v1784, %v1820
        %v1829 = vmul.f32 %v1786, %v1821
        %v1830 = vmul.f32 %v1788, %v1822
        %v1831 = vmul.f32 %v1790, %v1823
        %v1832 = vmul.f32 %v1792, %v1824
        %v1833 = vpack.c.bf16 %v1826, %v1825
        %v1834 = vpack.c.bf16 %v1828, %v1827
        %v1835 = vpack.c.bf16 %v1830, %v1829
        %v1836 = vpack.c.bf16 %v1832, %v1831
        %1837 = vrot.lane.b32.xlu0 %v1078, 64
        %v1838 = vpop.permute.xlu0 %1837
        %1839 = vrot.lane.b32.xlu0 %v1079, 64
        %v1840 = vpop.permute.xlu0 %1839
        %1841 = vrot.lane.b32.xlu0 %v1080, 64
        %v1842 = vpop.permute.xlu0 %1841
        %1843 = vrot.lane.b32.xlu0 %v1081, 64
        %v1844 = vpop.permute.xlu0 %1843
        %v1850 = vsel %vm1172, %v1833, 0
        %v1853 = vsel %vm1172, %v1834, 0
        %v1856 = vsel %vm1172, %v1835, 0
        %v1859 = vsel %vm1172, %v1836, 0
        %1861 = vmatprep.subr.bf16.mxu0 0
        %1862 = vmatpush1.bf16.msra.mxu0 %v1838
        %1863 = vmatprep.subr.bf16.mxu0 0
        %1864 = vmatpush1.bf16.msra.mxu0 %v1840
        %1865 = vmatprep.subr.bf16.mxu0 0
        %1866 = vmatpush1.bf16.msra.mxu0 %v1842
        %1867 = vmatprep.subr.bf16.mxu0 0
        %1868 = vmatpush1.bf16.msra.mxu0 %v1844
        %1869 = vmatprep.subr.bf16.mxu0 0
        %1870 = vmatpush1.bf16.msra.mxu0 0
        %1871 = vmatprep.subr.bf16.mxu0 0
        %1872 = vmatpush1.bf16.msra.mxu0 0
        %1873 = vmatprep.subr.bf16.mxu0 0
        %1874 = vmatpush1.bf16.msra.mxu0 0
        %1875 = vmatprep.subr.bf16.mxu0 0
        %1876 = vmatpush1.bf16.msra.mxu0 0
        %1877 = vmatprep.subr.bf16.mxu0 0
        %1878 = vmatpush1.bf16.msra.mxu0 0
        %1879 = vmatprep.subr.bf16.mxu0 0
        %1880 = vmatpush1.bf16.msra.mxu0 0
        %1881 = vmatprep.subr.bf16.mxu0 0
        %1882 = vmatpush1.bf16.msra.mxu0 0
        %1883 = vmatprep.subr.bf16.mxu0 0
        %1884 = vmatpush1.bf16.msra.mxu0 0
        %1885 = vmatprep.subr.bf16.mxu0 0
        %1886 = vmatpush1.bf16.msra.mxu0 0
        %1887 = vmatprep.subr.bf16.mxu0 0
        %1888 = vmatpush1.bf16.msra.mxu0 0
        %1889 = vmatprep.subr.bf16.mxu0 0
        %1890 = vmatpush1.bf16.msra.mxu0 0
        %1891 = vmatprep.subr.bf16.mxu0 0
        %1892 = vmatpush1.bf16.msra.mxu0 0
        %1893 = vmatprep.mubr.bf16.mxu0 0
        %1894 = vmatmul.mubr.bf16.gmra.mrb[0].mxu0 %v1850
        %v1895 = vpop.f32.mrb[0].mxu0
        %v1896 = vadd.f32 0.0, %v1895
        %v1897 = vpop.f32.mrb[0].mxu0
        %v1898 = vpop.f32.mrb[0].mxu0
        %v1899 = vadd.f32 0.0, %v1898
        %v1900 = vpop.f32.mrb[0].mxu0
        %1901 = vmatprep.mubr.bf16.mxu0 0
        %1902 = vmatmul.mubr.bf16.gmra.mrb[0].mxu0 %v1853
        %v1903 = vpop.f32.mrb[0].mxu0
        %v1904 = vadd.f32 0.0, %v1903
        %v1905 = vpop.f32.mrb[0].mxu0
        %v1906 = vpop.f32.mrb[0].mxu0
        %v1907 = vadd.f32 0.0, %v1906
        %v1908 = vpop.f32.mrb[0].mxu0
        %1909 = vmatprep.mubr.bf16.mxu0 0
        %1910 = vmatmul.mubr.bf16.gmra.mrb[0].mxu0 %v1856
        %v1911 = vpop.f32.mrb[0].mxu0
        %v1912 = vadd.f32 0.0, %v1911
        %v1913 = vpop.f32.mrb[0].mxu0
        %v1914 = vpop.f32.mrb[0].mxu0
        %v1915 = vadd.f32 0.0, %v1914
        %v1916 = vpop.f32.mrb[0].mxu0
        %1917 = vmatprep.mubr.bf16.mxu0 0
        %1918 = vmatmul.mubr.bf16.gmra.mrb[0].mxu0 %v1859
        %v1919 = vpop.f32.mrb[0].mxu0
        %v1920 = vadd.f32 0.0, %v1919
        %v1921 = vpop.f32.mrb[0].mxu0
        %v1922 = vpop.f32.mrb[0].mxu0
        %v1923 = vadd.f32 0.0, %v1922
        %v1924 = vpop.f32.mrb[0].mxu0
        %1925 = vdwg.mxu0
        %1926 = vrot.lane.b32.xlu0 %v1070, 32
        %v1927 = vpop.permute.xlu0 %1926
        %1928 = vrot.lane.b32.xlu0 %v1071, 32
        %v1929 = vpop.permute.xlu0 %1928
        %1930 = vrot.lane.b32.xlu0 %v1072, 32
        %v1931 = vpop.permute.xlu0 %1930
        %1932 = vrot.lane.b32.xlu0 %v1073, 32
        %v1933 = vpop.permute.xlu0 %1932
        %1934 = vrot.lane.b32.xlu0 %v1074, 32
        %v1935 = vpop.permute.xlu0 %1934
        %1936 = vrot.lane.b32.xlu0 %v1075, 32
        %v1937 = vpop.permute.xlu0 %1936
        %1938 = vrot.lane.b32.xlu0 %v1076, 32
        %v1939 = vpop.permute.xlu0 %1938
        %1940 = vrot.lane.b32.xlu0 %v1077, 32
        %v1941 = vpop.permute.xlu0 %1940
        %v1943 = vsel %vm1082, %v1927, 0
        %v1946 = vsel %vm1082, %v1929, 0
        %v1949 = vsel %vm1082, %v1931, 0
        %v1952 = vsel %vm1082, %v1933, 0
        %v1955 = vsel %vm1082, %v1935, 0
        %v1958 = vsel %vm1082, %v1937, 0
        %v1961 = vsel %vm1082, %v1939, 0
        %v1964 = vsel %vm1082, %v1941, 0
        %1966 = vmatprep.subr.bf16.mxu0 0
        %1967 = vmatpush1.bf16.xpose.msra.mxu0 %v1955
        %1968 = vmatprep.subr.bf16.mxu0 0
        %1969 = vmatpush1.bf16.xpose.msra.mxu0 %v1958
        %1970 = vmatprep.subr.bf16.mxu0 0
        %1971 = vmatpush1.bf16.xpose.msra.mxu0 %v1961
        %1972 = vmatprep.subr.bf16.mxu0 0
        %1973 = vmatpush1.bf16.xpose.msra.mxu0 %v1964
        %1974 = vmatprep.subr.bf16.mxu0 0
        %1975 = vmatpush1.bf16.xpose.msra.mxu0 0
        %1976 = vmatprep.subr.bf16.mxu0 0
        %1977 = vmatpush1.bf16.xpose.msra.mxu0 0
        %1978 = vmatprep.subr.bf16.mxu0 0
        %1979 = vmatpush1.bf16.xpose.msra.mxu0 0
        %1980 = vmatprep.subr.bf16.mxu0 0
        %1981 = vmatpush1.bf16.xpose.msra.mxu0 0
        %1982 = vmatprep.subr.bf16.mxu0 0
        %1983 = vmatpush1.bf16.xpose.msra.mxu0 0
        %1984 = vmatprep.subr.bf16.mxu0 0
        %1985 = vmatpush1.bf16.xpose.msra.mxu0 0
        %1986 = vmatprep.subr.bf16.mxu0 0
        %1987 = vmatpush1.bf16.xpose.msra.mxu0 0
        %1988 = vmatprep.subr.bf16.mxu0 0
        %1989 = vmatpush1.bf16.xpose.msra.mxu0 0
        %1990 = vmatprep.subr.bf16.mxu0 0
        %1991 = vmatpush1.bf16.xpose.msra.mxu0 0
        %1992 = vmatprep.subr.bf16.mxu0 0
        %1993 = vmatpush1.bf16.xpose.msra.mxu0 0
        %1994 = vmatprep.subr.bf16.mxu0 0
        %1995 = vmatpush1.bf16.xpose.msra.mxu0 0
        %1996 = vmatprep.subr.bf16.mxu0 0
        %1997 = vmatpush1.bf16.xpose.msra.mxu0 0
        %1998 = vmatprep.mubr.bf16.mxu0 0
        %1999 = vmatmul.mubr.bf16.gmra.mrb[0].mxu0 %v1943
        %v2000 = vpop.f32.mrb[0].mxu0
        %v2001 = vadd.f32 0.0, %v2000
        %v2002 = vpop.f32.mrb[0].mxu0
        %v2003 = vpop.f32.mrb[0].mxu0
        %v2004 = vadd.f32 0.0, %v2003
        %v2005 = vpop.f32.mrb[0].mxu0
        %2006 = vmatprep.mubr.bf16.mxu0 0
        %2007 = vmatmul.mubr.bf16.gmra.mrb[0].mxu0 %v1946
        %v2008 = vpop.f32.mrb[0].mxu0
        %v2009 = vadd.f32 0.0, %v2008
        %v2010 = vpop.f32.mrb[0].mxu0
        %v2011 = vpop.f32.mrb[0].mxu0
        %v2012 = vadd.f32 0.0, %v2011
        %v2013 = vpop.f32.mrb[0].mxu0
        %2014 = vmatprep.mubr.bf16.mxu0 0
        %2015 = vmatmul.mubr.bf16.gmra.mrb[0].mxu0 %v1949
        %v2016 = vpop.f32.mrb[0].mxu0
        %v2017 = vadd.f32 0.0, %v2016
        %v2018 = vpop.f32.mrb[0].mxu0
        %v2019 = vpop.f32.mrb[0].mxu0
        %v2020 = vadd.f32 0.0, %v2019
        %v2021 = vpop.f32.mrb[0].mxu0
        %2022 = vmatprep.mubr.bf16.mxu0 0
        %2023 = vmatmul.mubr.bf16.gmra.mrb[0].mxu0 %v1952
        %v2024 = vpop.f32.mrb[0].mxu0
        %v2025 = vadd.f32 0.0, %v2024
        %v2026 = vpop.f32.mrb[0].mxu0
        %v2027 = vpop.f32.mrb[0].mxu0
        %v2028 = vadd.f32 0.0, %v2027
        %v2029 = vpop.f32.mrb[0].mxu0
        %2030 = vdwg.mxu0
        %v2031 = vsel %vm1172, %v2001, -inf
        %2032 = vmax.xlane.f32.xlu0 %v2031
        %v2033 = vpop.xlane.xlu0 %2032
        %v2034 = vsel %vm1172, %v2004, -inf
        %2035 = vmax.xlane.f32.xlu0 %v2034
        %v2036 = vpop.xlane.xlu0 %2035
        %v2037 = vsel %vm1172, %v2009, -inf
        %2038 = vmax.xlane.f32.xlu0 %v2037
        %v2039 = vpop.xlane.xlu0 %2038
        %v2040 = vsel %vm1172, %v2012, -inf
        %2041 = vmax.xlane.f32.xlu0 %v2040
        %v2042 = vpop.xlane.xlu0 %2041
        %v2043 = vsel %vm1172, %v2017, -inf
        %2044 = vmax.xlane.f32.xlu0 %v2043
        %v2045 = vpop.xlane.xlu0 %2044
        %v2046 = vsel %vm1172, %v2020, -inf
        %2047 = vmax.xlane.f32.xlu0 %v2046
        %v2048 = vpop.xlane.xlu0 %2047
        %v2049 = vsel %vm1172, %v2025, -inf
        %2050 = vmax.xlane.f32.xlu0 %v2049
        %v2051 = vpop.xlane.xlu0 %2050
        %v2052 = vsel %vm1172, %v2028, -inf
        %2053 = vmax.xlane.f32.xlu0 %v2052
        %v2054 = vpop.xlane.xlu0 %2053
        %v2055 = vsub.f32 %v2001, %v2033
        %v2056 = vsub.f32 %v2004, %v2036
        %v2057 = vsub.f32 %v2009, %v2039
        %v2058 = vsub.f32 %v2012, %v2042
        %v2059 = vsub.f32 %v2017, %v2045
        %v2060 = vsub.f32 %v2020, %v2048
        %v2061 = vsub.f32 %v2025, %v2051
        %v2062 = vsub.f32 %v2028, %v2054
        %v2063 = vmul.f32 %v2055, 1.442695
        %v2064 = vpow.pop %v2063
        %v2065 = vmul.f32 %v2056, 1.442695
        %v2066 = vpow.pop %v2065
        %v2067 = vmul.f32 %v2057, 1.442695
        %v2068 = vpow.pop %v2067
        %v2069 = vmul.f32 %v2058, 1.442695
        %v2070 = vpow.pop %v2069
        %v2071 = vmul.f32 %v2059, 1.442695
        %v2072 = vpow.pop %v2071
        %v2073 = vmul.f32 %v2060, 1.442695
        %v2074 = vpow.pop %v2073
        %v2075 = vmul.f32 %v2061, 1.442695
        %v2076 = vpow.pop %v2075
        %v2077 = vmul.f32 %v2062, 1.442695
        %v2078 = vpow.pop %v2077
        %v2079 = vsel %vm1172, %v2064, 0.0
        %2080 = vadd.xlane.f32.xlu0 %v2079
        %v2081 = vpop.xlane.xlu0 %2080
        %v2082 = vsel %vm1172, %v2066, 0.0
        %2083 = vadd.xlane.f32.xlu0 %v2082
        %v2084 = vpop.xlane.xlu0 %2083
        %v2085 = vsel %vm1172, %v2068, 0.0
        %2086 = vadd.xlane.f32.xlu0 %v2085
        %v2087 = vpop.xlane.xlu0 %2086
        %v2088 = vsel %vm1172, %v2070, 0.0
        %2089 = vadd.xlane.f32.xlu0 %v2088
        %v2090 = vpop.xlane.xlu0 %2089
        %v2091 = vsel %vm1172, %v2072, 0.0
        %2092 = vadd.xlane.f32.xlu0 %v2091
        %v2093 = vpop.xlane.xlu0 %2092
        %v2094 = vsel %vm1172, %v2074, 0.0
        %2095 = vadd.xlane.f32.xlu0 %v2094
        %v2096 = vpop.xlane.xlu0 %2095
        %v2097 = vsel %vm1172, %v2076, 0.0
        %2098 = vadd.xlane.f32.xlu0 %v2097
        %v2099 = vpop.xlane.xlu0 %2098
        %v2100 = vsel %vm1172, %v2078, 0.0
        %2101 = vadd.xlane.f32.xlu0 %v2100
        %v2102 = vpop.xlane.xlu0 %2101
        %v2103 = vrcp.pop %v2081
        %v2104 = vrcp.pop %v2084
        %v2105 = vrcp.pop %v2087
        %v2106 = vrcp.pop %v2090
        %v2107 = vrcp.pop %v2093
        %v2108 = vrcp.pop %v2096
        %v2109 = vrcp.pop %v2099
        %v2110 = vrcp.pop %v2102
        %v2111 = vmul.f32 %v2064, %v2103
        %v2112 = vmul.f32 %v2066, %v2104
        %v2113 = vmul.f32 %v2068, %v2105
        %v2114 = vmul.f32 %v2070, %v2106
        %v2115 = vmul.f32 %v2072, %v2107
        %v2116 = vmul.f32 %v2074, %v2108
        %v2117 = vmul.f32 %v2076, %v2109
        %v2118 = vmul.f32 %v2078, %v2110
        %v2119 = vpack.c.bf16 %v2112, %v2111
        %v2120 = vpack.c.bf16 %v2114, %v2113
        %v2121 = vpack.c.bf16 %v2116, %v2115
        %v2122 = vpack.c.bf16 %v2118, %v2117
        %2123 = vrot.lane.b32.xlu0 %v1078, 32
        %v2124 = vpop.permute.xlu0 %2123
        %2125 = vrot.lane.b32.xlu0 %v1079, 32
        %v2126 = vpop.permute.xlu0 %2125
        %2127 = vrot.lane.b32.xlu0 %v1080, 32
        %v2128 = vpop.permute.xlu0 %2127
        %2129 = vrot.lane.b32.xlu0 %v1081, 32
        %v2130 = vpop.permute.xlu0 %2129
        %v2136 = vsel %vm1172, %v2119, 0
        %v2139 = vsel %vm1172, %v2120, 0
        %v2142 = vsel %vm1172, %v2121, 0
        %v2145 = vsel %vm1172, %v2122, 0
        %2147 = vmatprep.subr.bf16.mxu0 0
        %2148 = vmatpush1.bf16.msra.mxu0 %v2124
        %2149 = vmatprep.subr.bf16.mxu0 0
        %2150 = vmatpush1.bf16.msra.mxu0 %v2126
        %2151 = vmatprep.subr.bf16.mxu0 0
        %2152 = vmatpush1.bf16.msra.mxu0 %v2128
        %2153 = vmatprep.subr.bf16.mxu0 0
        %2154 = vmatpush1.bf16.msra.mxu0 %v2130
        %2155 = vmatprep.subr.bf16.mxu0 0
        %2156 = vmatpush1.bf16.msra.mxu0 0
        %2157 = vmatprep.subr.bf16.mxu0 0
        %2158 = vmatpush1.bf16.msra.mxu0 0
        %2159 = vmatprep.subr.bf16.mxu0 0
        %2160 = vmatpush1.bf16.msra.mxu0 0
        %2161 = vmatprep.subr.bf16.mxu0 0
        %2162 = vmatpush1.bf16.msra.mxu0 0
        %2163 = vmatprep.subr.bf16.mxu0 0
        %2164 = vmatpush1.bf16.msra.mxu0 0
        %2165 = vmatprep.subr.bf16.mxu0 0
        %2166 = vmatpush1.bf16.msra.mxu0 0
        %2167 = vmatprep.subr.bf16.mxu0 0
        %2168 = vmatpush1.bf16.msra.mxu0 0
        %2169 = vmatprep.subr.bf16.mxu0 0
        %2170 = vmatpush1.bf16.msra.mxu0 0
        %2171 = vmatprep.subr.bf16.mxu0 0
        %2172 = vmatpush1.bf16.msra.mxu0 0
        %2173 = vmatprep.subr.bf16.mxu0 0
        %2174 = vmatpush1.bf16.msra.mxu0 0
        %2175 = vmatprep.subr.bf16.mxu0 0
        %2176 = vmatpush1.bf16.msra.mxu0 0
        %2177 = vmatprep.subr.bf16.mxu0 0
        %2178 = vmatpush1.bf16.msra.mxu0 0
        %2179 = vmatprep.mubr.bf16.mxu0 0
        %2180 = vmatmul.mubr.bf16.gmra.mrb[0].mxu0 %v2136
        %v2181 = vpop.f32.mrb[0].mxu0
        %v2182 = vadd.f32 0.0, %v2181
        %v2183 = vpop.f32.mrb[0].mxu0
        %v2184 = vpop.f32.mrb[0].mxu0
        %v2185 = vadd.f32 0.0, %v2184
        %v2186 = vpop.f32.mrb[0].mxu0
        %2187 = vmatprep.mubr.bf16.mxu0 0
        %2188 = vmatmul.mubr.bf16.gmra.mrb[0].mxu0 %v2139
        %v2189 = vpop.f32.mrb[0].mxu0
        %v2190 = vadd.f32 0.0, %v2189
        %v2191 = vpop.f32.mrb[0].mxu0
        %v2192 = vpop.f32.mrb[0].mxu0
        %v2193 = vadd.f32 0.0, %v2192
        %v2194 = vpop.f32.mrb[0].mxu0
        %2195 = vmatprep.mubr.bf16.mxu0 0
        %2196 = vmatmul.mubr.bf16.gmra.mrb[0].mxu0 %v2142
        %v2197 = vpop.f32.mrb[0].mxu0
        %v2198 = vadd.f32 0.0, %v2197
        %v2199 = vpop.f32.mrb[0].mxu0
        %v2200 = vpop.f32.mrb[0].mxu0
        %v2201 = vadd.f32 0.0, %v2200
        %v2202 = vpop.f32.mrb[0].mxu0
        %2203 = vmatprep.mubr.bf16.mxu0 0
        %2204 = vmatmul.mubr.bf16.gmra.mrb[0].mxu0 %v2145
        %v2205 = vpop.f32.mrb[0].mxu0
        %v2206 = vadd.f32 0.0, %v2205
        %v2207 = vpop.f32.mrb[0].mxu0
        %v2208 = vpop.f32.mrb[0].mxu0
        %v2209 = vadd.f32 0.0, %v2208
        %v2210 = vpop.f32.mrb[0].mxu0
        %2211 = vdwg.mxu0
        %2220 = vrot.lane.b32.xlu0 %v1610, 32
        %v2221 = vpop.permute.xlu0 %2220
        %2222 = vrot.lane.b32.xlu0 %v1613, 32
        %v2223 = vpop.permute.xlu0 %2222
        %2224 = vrot.lane.b32.xlu0 %v1618, 32
        %v2225 = vpop.permute.xlu0 %2224
        %2226 = vrot.lane.b32.xlu0 %v1621, 32
        %v2227 = vpop.permute.xlu0 %2226
        %2228 = vrot.lane.b32.xlu0 %v1626, 32
        %v2229 = vpop.permute.xlu0 %2228
        %2230 = vrot.lane.b32.xlu0 %v1629, 32
        %v2231 = vpop.permute.xlu0 %2230
        %2232 = vrot.lane.b32.xlu0 %v1634, 32
        %v2233 = vpop.permute.xlu0 %2232
        %2234 = vrot.lane.b32.xlu0 %v1637, 32
        %v2235 = vpop.permute.xlu0 %2234
        %2252 = vrot.lane.b32.xlu0 %v1896, 64
        %v2253 = vpop.permute.xlu0 %2252
        %2254 = vrot.lane.b32.xlu0 %v1899, 64
        %v2255 = vpop.permute.xlu0 %2254
        %2256 = vrot.lane.b32.xlu0 %v1904, 64
        %v2257 = vpop.permute.xlu0 %2256
        %2258 = vrot.lane.b32.xlu0 %v1907, 64
        %v2259 = vpop.permute.xlu0 %2258
        %2260 = vrot.lane.b32.xlu0 %v1912, 64
        %v2261 = vpop.permute.xlu0 %2260
        %2262 = vrot.lane.b32.xlu0 %v1915, 64
        %v2263 = vpop.permute.xlu0 %2262
        %2264 = vrot.lane.b32.xlu0 %v1920, 64
        %v2265 = vpop.permute.xlu0 %2264
        %2266 = vrot.lane.b32.xlu0 %v1923, 64
        %v2267 = vpop.permute.xlu0 %2266
        %2284 = vrot.lane.b32.xlu0 %v2182, 96
        %v2285 = vpop.permute.xlu0 %2284
        %2286 = vrot.lane.b32.xlu0 %v2185, 96
        %v2287 = vpop.permute.xlu0 %2286
        %2288 = vrot.lane.b32.xlu0 %v2190, 96
        %v2289 = vpop.permute.xlu0 %2288
        %2290 = vrot.lane.b32.xlu0 %v2193, 96
        %v2291 = vpop.permute.xlu0 %2290
        %2292 = vrot.lane.b32.xlu0 %v2198, 96
        %v2293 = vpop.permute.xlu0 %2292
        %2294 = vrot.lane.b32.xlu0 %v2201, 96
        %v2295 = vpop.permute.xlu0 %2294
        %2296 = vrot.lane.b32.xlu0 %v2206, 96
        %v2297 = vpop.permute.xlu0 %2296
        %2298 = vrot.lane.b32.xlu0 %v2209, 96
        %v2299 = vpop.permute.xlu0 %2298
        %v2308 = vsel %vm1082, %v1312, %v2221
        %v2309 = vsel %vm1082, %v1315, %v2223
        %v2310 = vsel %vm1082, %v1320, %v2225
        %v2311 = vsel %vm1082, %v1323, %v2227
        %v2312 = vsel %vm1082, %v1328, %v2229
        %v2313 = vsel %vm1082, %v1331, %v2231
        %v2314 = vsel %vm1082, %v1336, %v2233
        %v2315 = vsel %vm1082, %v1339, %v2235
        %v2316 = vsel %vm1172, %v2308, %v2253
        %v2317 = vsel %vm1172, %v2309, %v2255
        %v2318 = vsel %vm1172, %v2310, %v2257
        %v2319 = vsel %vm1172, %v2311, %v2259
        %v2320 = vsel %vm1172, %v2312, %v2261
        %v2321 = vsel %vm1172, %v2313, %v2263
        %v2322 = vsel %vm1172, %v2314, %v2265
        %v2323 = vsel %vm1172, %v2315, %v2267
        %vm2324 = vcmask 785408
        %v2325 = vsel %vm2324, %v2316, %v2285
        %v2326 = vsel %vm2324, %v2317, %v2287
        %v2327 = vsel %vm2324, %v2318, %v2289
        %v2328 = vsel %vm2324, %v2319, %v2291
        %v2329 = vsel %vm2324, %v2320, %v2293
        %v2330 = vsel %vm2324, %v2321, %v2295
        %v2331 = vsel %vm2324, %v2322, %v2297
        %v2332 = vsel %vm2324, %v2323, %v2299
        %v2333 = vpack.c.bf16 %v2326, %v2325
        %v2334 = vpack.c.bf16 %v2328, %v2327
        %v2335 = vpack.c.bf16 %v2330, %v2329
        %v2336 = vpack.c.bf16 %v2332, %v2331
        %s2337 = smul.u32 %s31, 16
        %s2338 = smul.addr %s2337, 4
        %s2339 = scalar_lea.vmem %s7, %s2338
        %v2340 = vld [vmem:[%s2339] sm:$0xf]
        %v2341 = vld [vmem:[%s2339 + $0x4] sm:$0xf]
        %v2342 = vld [vmem:[%s2339 + $0x8] sm:$0xf]
        %v2343 = vld [vmem:[%s2339 + $0xc] sm:$0xf]
        %v2344 = vld [vmem:[%s2339 + $0x10] sm:$0xf]
        %v2345 = vld [vmem:[%s2339 + $0x14] sm:$0xf]
        %v2346 = vld [vmem:[%s2339 + $0x18] sm:$0xf]
        %v2347 = vld [vmem:[%s2339 + $0x1c] sm:$0xf]
        %v2348 = vld [vmem:[%s2339 + $0x20] sm:$0xf]
        %v2349 = vld [vmem:[%s2339 + $0x24] sm:$0xf]
        %v2350 = vld [vmem:[%s2339 + $0x28] sm:$0xf]
        %v2351 = vld [vmem:[%s2339 + $0x2c] sm:$0xf]
        %v2352 = vld [vmem:[%s2339 + $0x30] sm:$0xf]
        %v2353 = vld [vmem:[%s2339 + $0x34] sm:$0xf]
        %v2354 = vld [vmem:[%s2339 + $0x38] sm:$0xf]
        %v2355 = vld [vmem:[%s2339 + $0x3c] sm:$0xf]
        %v2372 = vunpack.c.l.b16 %v2340
        %v2373 = vunpack.c.l.b16 %v2341
        %v2374 = vunpack.c.l.b16 %v2342
        %v2375 = vunpack.c.l.b16 %v2343
        %v2376 = vunpack.c.l.b16 %v2344
        %v2377 = vunpack.c.l.b16 %v2345
        %v2378 = vunpack.c.l.b16 %v2346
        %v2379 = vunpack.c.l.b16 %v2347
        %v2380 = vunpack.c.l.b16 %v2348
        %v2381 = vunpack.c.l.b16 %v2349
        %v2382 = vunpack.c.l.b16 %v2350
        %v2383 = vunpack.c.l.b16 %v2351
        %v2384 = vunpack.c.l.b16 %v2352
        %v2385 = vunpack.c.l.b16 %v2353
        %v2386 = vunpack.c.l.b16 %v2354
        %v2387 = vunpack.c.l.b16 %v2355
        %v2388 = vpack.c.b16 %v2373, %v2372
        %v2389 = vpack.c.b16 %v2375, %v2374
        %v2390 = vpack.c.b16 %v2377, %v2376
        %v2391 = vpack.c.b16 %v2379, %v2378
        %v2392 = vpack.c.b16 %v2381, %v2380
        %v2393 = vpack.c.b16 %v2383, %v2382
        %v2394 = vpack.c.b16 %v2385, %v2384
        %v2395 = vpack.c.b16 %v2387, %v2386
        %2404 = vmatprep.subr.bf16.mxu0 0
        %2405 = vmatpush1.bf16.msra.mxu0 %v2388
        %2406 = vmatprep.subr.bf16.mxu0 0
        %2407 = vmatpush1.bf16.msra.mxu0 %v2389
        %2408 = vmatprep.subr.bf16.mxu0 0
        %2409 = vmatpush1.bf16.msra.mxu0 %v2390
        %2410 = vmatprep.subr.bf16.mxu0 0
        %2411 = vmatpush1.bf16.msra.mxu0 %v2391
        %2412 = vmatprep.subr.bf16.mxu0 0
        %2413 = vmatpush1.bf16.msra.mxu0 %v2392
        %2414 = vmatprep.subr.bf16.mxu0 0
        %2415 = vmatpush1.bf16.msra.mxu0 %v2393
        %2416 = vmatprep.subr.bf16.mxu0 0
        %2417 = vmatpush1.bf16.msra.mxu0 %v2394
        %2418 = vmatprep.subr.bf16.mxu0 0
        %2419 = vmatpush1.bf16.msra.mxu0 %v2395
        %2420 = vmatprep.subr.bf16.mxu0 0
        %2421 = vmatpush1.bf16.msra.mxu0 0
        %2422 = vmatprep.subr.bf16.mxu0 0
        %2423 = vmatpush1.bf16.msra.mxu0 0
        %2424 = vmatprep.subr.bf16.mxu0 0
        %2425 = vmatpush1.bf16.msra.mxu0 0
        %2426 = vmatprep.subr.bf16.mxu0 0
        %2427 = vmatpush1.bf16.msra.mxu0 0
        %2428 = vmatprep.subr.bf16.mxu0 0
        %2429 = vmatpush1.bf16.msra.mxu0 0
        %2430 = vmatprep.subr.bf16.mxu0 0
        %2431 = vmatpush1.bf16.msra.mxu0 0
        %2432 = vmatprep.subr.bf16.mxu0 0
        %2433 = vmatpush1.bf16.msra.mxu0 0
        %2434 = vmatprep.subr.bf16.mxu0 0
        %2435 = vmatpush1.bf16.msra.mxu0 0
        %2436 = vmatprep.mubr.bf16.mxu0 0
        %2437 = vmatmul.mubr.bf16.gmra.mrb[0].mxu0 %v2333
        %v2438 = vpop.f32.mrb[0].mxu0
        %v2439 = vadd.f32 0.0, %v2438
        %v2440 = vpop.f32.mrb[0].mxu0
        %v2441 = vpop.f32.mrb[0].mxu0
        %v2442 = vadd.f32 0.0, %v2441
        %v2443 = vpop.f32.mrb[0].mxu0
        %2444 = vmatprep.mubr.bf16.mxu0 0
        %2445 = vmatmul.mubr.bf16.gmra.mrb[0].mxu0 %v2334
        %v2446 = vpop.f32.mrb[0].mxu0
        %v2447 = vadd.f32 0.0, %v2446
        %v2448 = vpop.f32.mrb[0].mxu0
        %v2449 = vpop.f32.mrb[0].mxu0
        %v2450 = vadd.f32 0.0, %v2449
        %v2451 = vpop.f32.mrb[0].mxu0
        %2452 = vmatprep.mubr.bf16.mxu0 0
        %2453 = vmatmul.mubr.bf16.gmra.mrb[0].mxu0 %v2335
        %v2454 = vpop.f32.mrb[0].mxu0
        %v2455 = vadd.f32 0.0, %v2454
        %v2456 = vpop.f32.mrb[0].mxu0
        %v2457 = vpop.f32.mrb[0].mxu0
        %v2458 = vadd.f32 0.0, %v2457
        %v2459 = vpop.f32.mrb[0].mxu0
        %2460 = vmatprep.mubr.bf16.mxu0 0
        %2461 = vmatmul.mubr.bf16.gmra.mrb[0].mxu0 %v2336
        %v2462 = vpop.f32.mrb[0].mxu0
        %v2463 = vadd.f32 0.0, %v2462
        %v2464 = vpop.f32.mrb[0].mxu0
        %v2465 = vpop.f32.mrb[0].mxu0
        %v2466 = vadd.f32 0.0, %v2465
        %v2467 = vpop.f32.mrb[0].mxu0
        %2468 = vdwg.mxu0
        %v2469 = vadd.f32 %v738, %v2439
        %v2470 = vadd.f32 %v739, %v2442
        %v2471 = vadd.f32 %v740, %v2447
        %v2472 = vadd.f32 %v741, %v2450
        %v2473 = vadd.f32 %v742, %v2455
        %v2474 = vadd.f32 %v743, %v2458
        %v2475 = vadd.f32 %v744, %v2463
        %v2476 = vadd.f32 %v745, %v2466
        %s2477 = scalar_lea.vmem %s8, %s31
        %v2478 = vld [vmem:[%s2477] sm:$0x1]
        %v2480 = vlaneseq
        %v2481 = vshrl.u32 %v2480, 7
        %v2482 = vsub.s32 0, %v2481
        %v2483 = vrot.slane %v2478, %v2482
        %v2485 = vadd.f32 %v2469, %v2483
        %v2486 = vadd.f32 %v2470, %v2483
        %v2487 = vadd.f32 %v2471, %v2483
        %v2488 = vadd.f32 %v2472, %v2483
        %v2489 = vadd.f32 %v2473, %v2483
        %v2490 = vadd.f32 %v2474, %v2483
        %v2491 = vadd.f32 %v2475, %v2483
        %v2492 = vadd.f32 %v2476, %v2483
        %v2493 = vpack.c.bf16 %v2486, %v2485
        %v2494 = vpack.c.bf16 %v2488, %v2487
        %v2495 = vpack.c.bf16 %v2490, %v2489
        %v2496 = vpack.c.bf16 %v2492, %v2491
        %s2497 = smul.addr %s2337, 4
        %s2498 = scalar_lea.vmem [#allocation5], %s2497
        %v2499 = vld [vmem:[%s2498] sm:$0xf]
        %v2500 = vld [vmem:[%s2498 + $0x4] sm:$0xf]
        %v2501 = vld [vmem:[%s2498 + $0x8] sm:$0xf]
        %v2502 = vld [vmem:[%s2498 + $0xc] sm:$0xf]
        %v2503 = vld [vmem:[%s2498 + $0x10] sm:$0xf]
        %v2504 = vld [vmem:[%s2498 + $0x14] sm:$0xf]
        %v2505 = vld [vmem:[%s2498 + $0x18] sm:$0xf]
        %v2506 = vld [vmem:[%s2498 + $0x1c] sm:$0xf]
        %v2507 = vld [vmem:[%s2498 + $0x20] sm:$0xf]
        %v2508 = vld [vmem:[%s2498 + $0x24] sm:$0xf]
        %v2509 = vld [vmem:[%s2498 + $0x28] sm:$0xf]
        %v2510 = vld [vmem:[%s2498 + $0x2c] sm:$0xf]
        %v2511 = vld [vmem:[%s2498 + $0x30] sm:$0xf]
        %v2512 = vld [vmem:[%s2498 + $0x34] sm:$0xf]
        %v2513 = vld [vmem:[%s2498 + $0x38] sm:$0xf]
        %v2514 = vld [vmem:[%s2498 + $0x3c] sm:$0xf]
        %v2531 = vunpack.c.l.b16 %v2499
        %v2532 = vunpack.c.l.b16 %v2500
        %v2533 = vunpack.c.l.b16 %v2501
        %v2534 = vunpack.c.l.b16 %v2502
        %v2535 = vunpack.c.l.b16 %v2503
        %v2536 = vunpack.c.l.b16 %v2504
        %v2537 = vunpack.c.l.b16 %v2505
        %v2538 = vunpack.c.l.b16 %v2506
        %v2539 = vunpack.c.l.b16 %v2507
        %v2540 = vunpack.c.l.b16 %v2508
        %v2541 = vunpack.c.l.b16 %v2509
        %v2542 = vunpack.c.l.b16 %v2510
        %v2543 = vunpack.c.l.b16 %v2511
        %v2544 = vunpack.c.l.b16 %v2512
        %v2545 = vunpack.c.l.b16 %v2513
        %v2546 = vunpack.c.l.b16 %v2514
        %v2547 = vpack.c.b16 %v2532, %v2531
        %v2548 = vpack.c.b16 %v2534, %v2533
        %v2549 = vpack.c.b16 %v2536, %v2535
        %v2550 = vpack.c.b16 %v2538, %v2537
        %v2551 = vpack.c.b16 %v2540, %v2539
        %v2552 = vpack.c.b16 %v2542, %v2541
        %v2553 = vpack.c.b16 %v2544, %v2543
        %v2554 = vpack.c.b16 %v2546, %v2545
        %2563 = vmatprep.subr.bf16.mxu0 0
        %2564 = vmatpush1.bf16.msra.mxu0 %v2547
        %2565 = vmatprep.subr.bf16.mxu0 0
        %2566 = vmatpush1.bf16.msra.mxu0 %v2548
        %2567 = vmatprep.subr.bf16.mxu0 0
        %2568 = vmatpush1.bf16.msra.mxu0 %v2549
        %2569 = vmatprep.subr.bf16.mxu0 0
        %2570 = vmatpush1.bf16.msra.mxu0 %v2550
        %2571 = vmatprep.subr.bf16.mxu0 0
        %2572 = vmatpush1.bf16.msra.mxu0 %v2551
        %2573 = vmatprep.subr.bf16.mxu0 0
        %2574 = vmatpush1.bf16.msra.mxu0 %v2552
        %2575 = vmatprep.subr.bf16.mxu0 0
        %2576 = vmatpush1.bf16.msra.mxu0 %v2553
        %2577 = vmatprep.subr.bf16.mxu0 0
        %2578 = vmatpush1.bf16.msra.mxu0 %v2554
        %2579 = vmatprep.subr.bf16.mxu0 0
        %2580 = vmatpush1.bf16.msra.mxu0 0
        %2581 = vmatprep.subr.bf16.mxu0 0
        %2582 = vmatpush1.bf16.msra.mxu0 0
        %2583 = vmatprep.subr.bf16.mxu0 0
        %2584 = vmatpush1.bf16.msra.mxu0 0
        %2585 = vmatprep.subr.bf16.mxu0 0
        %2586 = vmatpush1.bf16.msra.mxu0 0
        %2587 = vmatprep.subr.bf16.mxu0 0
        %2588 = vmatpush1.bf16.msra.mxu0 0
        %2589 = vmatprep.subr.bf16.mxu0 0
        %2590 = vmatpush1.bf16.msra.mxu0 0
        %2591 = vmatprep.subr.bf16.mxu0 0
        %2592 = vmatpush1.bf16.msra.mxu0 0
        %2593 = vmatprep.subr.bf16.mxu0 0
        %2594 = vmatpush1.bf16.msra.mxu0 0
        %2595 = vmatprep.mubr.bf16.mxu0 0
        %2596 = vmatmul.mubr.bf16.gmra.mrb[0].mxu0 %v2493
        %v2597 = vpop.f32.mrb[0].mxu0
        %v2598 = vadd.f32 0.0, %v2597
        %v2599 = vpop.f32.mrb[0].mxu0
        %v2600 = vpop.f32.mrb[0].mxu0
        %v2601 = vadd.f32 0.0, %v2600
        %v2602 = vpop.f32.mrb[0].mxu0
        %2603 = vmatprep.mubr.bf16.mxu0 0
        %2604 = vmatmul.mubr.bf16.gmra.mrb[0].mxu0 %v2494
        %v2605 = vpop.f32.mrb[0].mxu0
        %v2606 = vadd.f32 0.0, %v2605
        %v2607 = vpop.f32.mrb[0].mxu0
        %v2608 = vpop.f32.mrb[0].mxu0
        %v2609 = vadd.f32 0.0, %v2608
        %v2610 = vpop.f32.mrb[0].mxu0
        %2611 = vmatprep.mubr.bf16.mxu0 0
        %2612 = vmatmul.mubr.bf16.gmra.mrb[0].mxu0 %v2495
        %v2613 = vpop.f32.mrb[0].mxu0
        %v2614 = vadd.f32 0.0, %v2613
        %v2615 = vpop.f32.mrb[0].mxu0
        %v2616 = vpop.f32.mrb[0].mxu0
        %v2617 = vadd.f32 0.0, %v2616
        %v2618 = vpop.f32.mrb[0].mxu0
        %2619 = vmatprep.mubr.bf16.mxu0 0
        %2620 = vmatmul.mubr.bf16.gmra.mrb[0].mxu0 %v2496
        %v2621 = vpop.f32.mrb[0].mxu0
        %v2622 = vadd.f32 0.0, %v2621
        %v2623 = vpop.f32.mrb[0].mxu0
        %v2624 = vpop.f32.mrb[0].mxu0
        %v2625 = vadd.f32 0.0, %v2624
        %v2626 = vpop.f32.mrb[0].mxu0
        %2627 = vdwg.mxu0
        %v2628 = vadd.f32 %v2485, %v2598
        %v2629 = vadd.f32 %v2486, %v2601
        %v2630 = vadd.f32 %v2487, %v2606
        %v2631 = vadd.f32 %v2488, %v2609
        %v2632 = vadd.f32 %v2489, %v2614
        %v2633 = vadd.f32 %v2490, %v2617
        %v2634 = vadd.f32 %v2491, %v2622
        %v2635 = vadd.f32 %v2492, %v2625
        %2636 = vst [vmem:[%s394] sm:$0xff] %v2628
        %2637 = vst [vmem:[%s394 + $0x8] sm:$0xff] %v2629
        %2638 = vst [vmem:[%s394 + $0x10] sm:$0xff] %v2630
        %2639 = vst [vmem:[%s394 + $0x18] sm:$0xff] %v2631
        %2640 = vst [vmem:[%s394 + $0x20] sm:$0xff] %v2632
        %2641 = vst [vmem:[%s394 + $0x28] sm:$0xff] %v2633
        %2642 = vst [vmem:[%s394 + $0x30] sm:$0xff] %v2634
        %2643 = vst [vmem:[%s394 + $0x38] sm:$0xff] %v2635
        %s2644 = sand.u32 %s261, 1
        %s2645 = scalar_lea.sflag [#allocation4], %s2644
        %s2646 = sand.u32 %s261, 1
        %s2647 = smul.addr %s2646, 64
        %s2648 = scalar_lea.vmem [#allocation7], %s2647
        // Predicated region
        $region73: #{tpu_custom_call.1} parent=59 // pred_check
          %p2649 = pneg %p271
        $region74: #{tpu_custom_call.1} parent=59 // pred_check_branch
          %2651 = sbr.rel (%p2649) target = $region76
        $region75: #{tpu_custom_call.1} parent=59 // pred_region
          %s2653 = ssub.s32 1024, 1024
          %2654 = vsyncadd %s2645, %s2653
          %s2655 = smul.addr %s30, 8
          %s2656 = smul.addr %s2655, 128
          %s2657 = scalar_lea.hbm %s10, %s2656
          %s2658 = sshll.u32 %s2648, 4
          %s2659 = int_to_ptr.vmem [resolvable:$true] %s2658
          %2664 = dma.vmem_to_hbm [thread:$0]  %s2659, 1024, %s2657, %s2645, 128, 128, 8
        $region76: #{tpu_custom_call.1} parent=59 // pred_fallthru
          _
      $region60: #{tpu_custom_call.1} parent=5 // pred_fallthru
        _
      %p2665 = scmp.le.s32.totalorder 2, %s21
      // Predicated region
      $region77: #{tpu_custom_call.1} parent=5 // pred_check
        %p2666 = pneg %p2665
      $region78: #{tpu_custom_call.1} parent=5 // pred_check_branch
        %2668 = sbr.rel (%p2666) target = $region80
      $region79: #{tpu_custom_call.1} parent=5 // pred_region
        %s2669 = ssub.s32 %s21, 2
        // Predicated region
        $region81: #{tpu_custom_call.1} parent=79 // pred_check
          %p2670 = pneg %p277
        $region82: #{tpu_custom_call.1} parent=79 // pred_check_branch
          %2672 = sbr.rel (%p2670) target = $region84
        $region83: #{tpu_custom_call.1} parent=79 // pred_region
          %s2673 = sand.u32 %s262, 1
          %s2674 = scalar_lea.sflag [#allocation4], %s2673
          %s2675 = sand.u32 %s262, 1
          %s2676 = smul.addr %s2675, 64
          %s2677 = scalar_lea.vmem [#allocation7], %s2676
          %2678 = dma.done %s2674, 1024
        $region84: #{tpu_custom_call.1} parent=79 // pred_fallthru
          _
      $region80: #{tpu_custom_call.1} parent=5 // pred_fallthru
        _
    $region6: #{tpu_custom_call.1} parent=1 // loop_footer
      %s25 = sadd.s32 1, %s21
    $region7: #{tpu_custom_call.1} parent=1 // loop_footer_branch
      %20 = sbr.rel target = $region3
    $region8: #{tpu_custom_call.1} parent=1 // loop_exit
      _
    %2679 = vsyncpa [#allocation3], 1
    %s2680 = scalar_lea.sflag [#allocation3], 1
    %2681 = vsyncpa %s2680, 1
    %2682 = vsyncpa [#allocation6], 1
    %2683 = vsyncpa [#allocation4], 1
    %s2684 = scalar_lea.sflag [#allocation4], 1
    %2685 = vsyncpa %s2684, 1

</llo_original>
